<compile_context>
chip_gen: v6e
topology: v6e:2x2x1
jax: 0.10.0
libtpu: 0.0.40
codegen_flags: <defaults>
</compile_context>

<pallas_src>
import functools

import jax
import jax.numpy as jnp
from jax import lax
from jax.experimental import pallas as pl
from jax.experimental.pallas import tpu as pltpu

# ---------------- small synthetic BERT config ----------------
B, S = 2, 8            # batch, sequence length
H, NH, DH = 32, 4, 8   # hidden, heads, head_dim
I = 64                 # FFN intermediate
L = 2                  # encoder layers
VOCAB = 100
MAX_POS = 32
EPS = 1e-12            # BERT LayerNorm eps


# ---------------- fused encoder kernel ----------------
def _layer_norm(x, g, b, eps=EPS):
    mean = jnp.mean(x, axis=-1, keepdims=True)
    var = jnp.mean(jnp.square(x - mean), axis=-1, keepdims=True)
    return (x - mean) * lax.rsqrt(var + eps) * g + b


def _encoder_kernel(x_emb_ref, mask_ref, embln_ref,
                    wqkv_ref, wo_ref, w1_ref, w2_ref, vecs_ref,
                    out_ref, *, num_layers, scale):
    # Embedding LayerNorm initializes the hidden state (f32, kept live in VMEM/regs).
    x0 = _layer_norm(x_emb_ref[0], embln_ref[0:1, :], embln_ref[1:2, :])
    mask = mask_ref[0]                                   # [1, S] additive attention bias

    def layer_body(l, x):
        # VMEM-resident weights; indexed per layer, no re-DMA.
        w_qkv = wqkv_ref[l]                              # [H, 3H] bf16
        w_o = wo_ref[l]                                  # [H, H]  bf16
        w_1 = w1_ref[l]                                  # [H, I]  bf16
        w_2 = w2_ref[l]                                  # [I, H]  bf16
        vec = vecs_ref[l]                                # [8, 3H] packed small params (f32)
        b_qkv = vec[0:1, :]                              # [1, 3H]
        b_o = vec[1:2, 0:H]
        ln1_g = vec[2:3, 0:H]
        ln1_b = vec[3:4, 0:H]
        b_1 = vec[4:5, 0:I]
        b_2 = vec[5:6, 0:H]
        ln2_g = vec[6:7, 0:H]
        ln2_b = vec[7:8, 0:H]

        # Fused QKV projection (bf16 MXU operands, f32 accumulation): [S, 3H]
        qkv = jnp.dot(x.astype(jnp.bfloat16), w_qkv,
                      preferred_element_type=jnp.float32) + b_qkv
        q = qkv[:, 0:H]
        k = qkv[:, H:2 * H]
        v = qkv[:, 2 * H:3 * H]

        # Batched all-head attention: relayout to [NH, S, DH] once, then batched dots
        # and one batched softmax (no per-head K transpose / per-head MXU loop).
        qh = jnp.stack([q[:, h * DH:(h + 1) * DH] for h in range(NH)], axis=0)
        kh = jnp.stack([k[:, h * DH:(h + 1) * DH] for h in range(NH)], axis=0)
        vh = jnp.stack([v[:, h * DH:(h + 1) * DH] for h in range(NH)], axis=0)
        s = jnp.einsum("nqd,nkd->nqk", qh, kh,
                       preferred_element_type=jnp.float32) * scale + mask   # [NH, S, S]
        s = s - jnp.max(s, axis=-1, keepdims=True)
        p = jnp.exp(s)
        p = p * pl.reciprocal(jnp.sum(p, axis=-1, keepdims=True), approx=True)
        ctx = jnp.einsum("nqk,nkd->nqd", p, vh,
                         preferred_element_type=jnp.float32)                # [NH, S, DH]
        ctx = jnp.concatenate([ctx[h] for h in range(NH)], axis=-1)         # [S, H]

        attn_out = jnp.dot(ctx.astype(jnp.bfloat16), w_o,
                           preferred_element_type=jnp.float32) + b_o
        x1 = _layer_norm(attn_out + x, ln1_g, ln1_b)

        ffn = jnp.dot(x1.astype(jnp.bfloat16), w_1,
                      preferred_element_type=jnp.float32) + b_1
        # TODO(synk): BERT uses exact erf-GELU; tanh-approx GELU used for safe Mosaic lowering.
        ffn = jax.nn.gelu(ffn, approximate=True)
        ffn = jnp.dot(ffn.astype(jnp.bfloat16), w_2,
                      preferred_element_type=jnp.float32) + b_2
        return _layer_norm(ffn + x1, ln2_g, ln2_b)

    x_final = lax.fori_loop(0, num_layers, layer_body, x0, unroll=True)

    # Only tokens 0 and 1 feed the classifier -> write just those rows.
    out_ref[0] = x_final[0:2, :]


def bert_encoder(x_emb, mask_bias, p):
    kern = functools.partial(_encoder_kernel, num_layers=L, scale=1.0 / (DH ** 0.5))

    def resident(arr):
        # Full-array block with a constant index_map -> VMEM-resident across all grid steps.
        if arr.ndim == 2:
            return pl.BlockSpec(arr.shape, lambda b: (0, 0))
        return pl.BlockSpec(arr.shape, lambda b: (0, 0, 0))

    return pl.pallas_call(
        kern,
        out_shape=jax.ShapeDtypeStruct((B, 2, H), jnp.float32),
        grid_spec=pltpu.PrefetchScalarGridSpec(
            num_scalar_prefetch=0,
            grid=(B,),                                             # batch only (parallel on v7x)
            in_specs=[
                pl.BlockSpec((1, S, H), lambda b: (b, 0, 0)),      # summed embeddings
                pl.BlockSpec((1, 1, S), lambda b: (b, 0, 0)),      # additive mask bias
                resident(p["emb_ln"]),                             # [2, H] emb LN gamma/beta
                resident(p["wqkv"]),                               # [L, H, 3H] bf16
                resident(p["wo"]),                                 # [L, H, H]  bf16
                resident(p["w1"]),                                 # [L, H, I]  bf16
                resident(p["w2"]),                                 # [L, I, H]  bf16
                resident(p["layer_vecs"]),                         # [L, 8, 3H] packed biases/LN
            ],
            out_specs=pl.BlockSpec((1, 2, H), lambda b: (b, 0, 0)),
        ),
        compiler_params=pltpu.CompilerParams(
            dimension_semantics=("parallel",)),
    )(x_emb, mask_bias, p["emb_ln"], p["wqkv"], p["wo"], p["w1"], p["w2"], p["layer_vecs"])


# ---------------- parameters (deterministic synthetic init) ----------------
def init_params(key):
    keys = iter(jax.random.split(key, 64))

    def nrm(*shape, dtype=jnp.float32):
        return (0.02 * jax.random.normal(next(keys), shape, jnp.float32)).astype(dtype)

    def stack_bf16(*shape):
        return jnp.stack([nrm(*shape, dtype=jnp.bfloat16) for _ in range(L)], axis=0)

    # Small per-layer vectors, coalesced into one packed [L, 8, 3H] array (single DMA stream).
    b_qkv = nrm(L, 3 * H)
    b_o = nrm(L, H)
    ln1_g = jnp.ones((L, H), jnp.float32)
    ln1_b = nrm(L, H)
    b_1 = nrm(L, I)
    b_2 = nrm(L, H)
    ln2_g = jnp.ones((L, H), jnp.float32)
    ln2_b = nrm(L, H)

    def pad(v):
        return jnp.pad(v, ((0, 0), (0, 3 * H - v.shape[-1])))

    layer_vecs = jnp.stack(
        [pad(b_qkv), pad(b_o), pad(ln1_g), pad(ln1_b),
         pad(b_1), pad(b_2), pad(ln2_g), pad(ln2_b)], axis=1)      # [L, 8, 3H]

    emb_ln = jnp.stack([jnp.ones((H,), jnp.float32),               # gamma
                        jnp.zeros((H,), jnp.float32)], axis=0)     # beta

    params = {
        "word_emb": nrm(VOCAB, H),
        "pos_emb": nrm(MAX_POS, H),
        "type_emb": nrm(2, H),
        "emb_ln": emb_ln,
        # per-layer weights stacked on a leading layer axis; MXU operands stored in bf16
        "wqkv": stack_bf16(H, 3 * H),
        "wo": stack_bf16(H, H),
        "w1": stack_bf16(H, I),
        "w2": stack_bf16(I, H),
        "layer_vecs": layer_vecs,
        "fc_w": nrm(2 * H, 1),                 # torch Linear(768*2, 1), stored [in, out]
        "fc_b": jnp.zeros((1,), jnp.float32),
    }
    return params


# ---------------- forward pass ----------------
def siamese_bert_forward(params, input_ids, attention_mask):
    # Embeddings: word + position + token_type(=0); LayerNorm happens inside the fused kernel.
    we = jnp.take(params["word_emb"], input_ids, axis=0)          # [B, S, H]
    pe = params["pos_emb"][:S][None, :, :]                        # [1, S, H]
    te = params["type_emb"][0][None, None, :]                     # [1, 1, H]
    x_emb = we + pe + te                                          # [B, S, H]

    # HF-style additive attention mask bias: (1 - mask) * -10000
    mask_bias = ((1.0 - attention_mask.astype(jnp.float32)) * -10000.0)[:, None, :]  # [B,1,S]

    h01 = bert_encoder(x_emb, mask_bias, params)                  # [B, 2, H] (tokens 0 and 1)

    # cat(output[:,0,:], output[:,1,:]) == reshape of the two returned rows.
    feat = h01.reshape(B, 2 * H)                                  # [B, 2H]
    logits = feat @ params["fc_w"] + params["fc_b"]
    return jax.nn.sigmoid(logits)                                 # [B, 1]


if __name__ == "__main__":
    key = jax.random.PRNGKey(0)
    pkey, ikey = jax.random.split(key)
    params = init_params(pkey)

    input_ids = jax.random.randint(ikey, (B, S), 0, VOCAB, dtype=jnp.int32)
    attention_mask = jnp.ones((B, S), jnp.int32).at[:, -2:].set(0)   # a little padding

    fwd = jax.jit(siamese_bert_forward)
    out = fwd(params, input_ids, attention_mask)
    jax.block_until_ready(out)

    assert out.shape == (B, 1) and out.dtype == jnp.float32
    assert bool(jnp.all((out >= 0.0) & (out <= 1.0)))
    print("KERNEL_OK")
</pallas_src>

<mosaic_0001>
module attributes {stable_mosaic.version = 11 : i64} {
  func.func @_encoder_kernel(%arg0: i32, %arg1: memref<1x8x32xf32, #tpu.memory_space<vmem>>, %arg2: memref<1x1x8xf32, #tpu.memory_space<vmem>>, %arg3: memref<2x32xf32, #tpu.memory_space<vmem>>, %arg4: memref<2x32x96xbf16, #tpu.memory_space<vmem>>, %arg5: memref<2x32x32xbf16, #tpu.memory_space<vmem>>, %arg6: memref<2x32x64xbf16, #tpu.memory_space<vmem>>, %arg7: memref<2x64x32xbf16, #tpu.memory_space<vmem>>, %arg8: memref<2x8x96xf32, #tpu.memory_space<vmem>>, %arg9: memref<1x2x32xf32, #tpu.memory_space<vmem>>) attributes {dimension_semantics = [#tpu.dimension_semantics<parallel>], iteration_bounds = array<i64: 2>, scalar_prefetch = 0 : i64, scratch_operands = 0 : i64, tpu.core_type = #tpu.core_type<tc>, window_params = [{transform_indices = @transform_0, window_bounds = array<i64: 1, 8, 32>}, {transform_indices = @transform_1, window_bounds = array<i64: 1, 1, 8>}, {pipeline_mode = #tpu.pipeline_mode<synchronous>, transform_indices = @transform_2, window_bounds = array<i64: 2, 32>}, {pipeline_mode = #tpu.pipeline_mode<synchronous>, transform_indices = @transform_3, window_bounds = array<i64: 2, 32, 96>}, {pipeline_mode = #tpu.pipeline_mode<synchronous>, transform_indices = @transform_4, window_bounds = array<i64: 2, 32, 32>}, {pipeline_mode = #tpu.pipeline_mode<synchronous>, transform_indices = @transform_5, window_bounds = array<i64: 2, 32, 64>}, {pipeline_mode = #tpu.pipeline_mode<synchronous>, transform_indices = @transform_6, window_bounds = array<i64: 2, 64, 32>}, {pipeline_mode = #tpu.pipeline_mode<synchronous>, transform_indices = @transform_7, window_bounds = array<i64: 2, 8, 96>}, {transform_indices = @transform_8, window_bounds = array<i64: 1, 2, 32>}]} {
    %c0 = arith.constant 0 : index
    %c0_0 = arith.constant 0 : index
    %c0_1 = arith.constant 0 : index
    %0 = vector.load %arg1[%c0, %c0_0, %c0_1] : memref<1x8x32xf32, #tpu.memory_space<vmem>>, vector<1x8x32xf32>
    %1 = vector.shape_cast %0 : vector<1x8x32xf32> to vector<8x32xf32>
    %c0_2 = arith.constant 0 : index
    %c0_3 = arith.constant 0 : index
    %2 = vector.load %arg3[%c0_2, %c0_3] : memref<2x32xf32, #tpu.memory_space<vmem>>, vector<1x32xf32>
    %c1 = arith.constant 1 : index
    %c0_4 = arith.constant 0 : index
    %3 = vector.load %arg3[%c1, %c0_4] : memref<2x32xf32, #tpu.memory_space<vmem>>, vector<1x32xf32>
    %cst = arith.constant dense<0.000000e+00> : vector<8xf32>
    %4 = vector.multi_reduction <add>, %1, %cst [1] : vector<8x32xf32> to vector<8xf32>
    %5 = vector.shape_cast %4 : vector<8xf32> to vector<8x1xf32>
    %cst_5 = arith.constant 3.200000e+01 : f32
    %6 = vector.broadcast %cst_5 : f32 to vector<8x1xf32>
    %7 = arith.divf %5, %6 : vector<8x1xf32>
    %8 = vector.broadcast %7 : vector<8x1xf32> to vector<8x32xf32>
    %9 = arith.subf %1, %8 : vector<8x32xf32>
    %10 = arith.mulf %9, %9 : vector<8x32xf32>
    %cst_6 = arith.constant dense<0.000000e+00> : vector<8xf32>
    %11 = vector.multi_reduction <add>, %10, %cst_6 [1] : vector<8x32xf32> to vector<8xf32>
    %12 = vector.shape_cast %11 : vector<8xf32> to vector<8x1xf32>
    %cst_7 = arith.constant 3.200000e+01 : f32
    %13 = vector.broadcast %cst_7 : f32 to vector<8x1xf32>
    %14 = arith.divf %12, %13 : vector<8x1xf32>
    %15 = vector.broadcast %7 : vector<8x1xf32> to vector<8x32xf32>
    %16 = arith.subf %1, %15 : vector<8x32xf32>
    %cst_8 = arith.constant 9.99999996E-13 : f32
    %17 = vector.broadcast %cst_8 : f32 to vector<8x1xf32>
    %18 = arith.addf %14, %17 : vector<8x1xf32>
    %19 = math.rsqrt %18 : vector<8x1xf32>
    %20 = vector.broadcast %19 : vector<8x1xf32> to vector<8x32xf32>
    %21 = arith.mulf %16, %20 : vector<8x32xf32>
    %22 = vector.broadcast %2 : vector<1x32xf32> to vector<8x32xf32>
    %23 = arith.mulf %21, %22 : vector<8x32xf32>
    %24 = vector.broadcast %3 : vector<1x32xf32> to vector<8x32xf32>
    %25 = arith.addf %23, %24 : vector<8x32xf32>
    %c0_9 = arith.constant 0 : index
    %c0_10 = arith.constant 0 : index
    %c0_11 = arith.constant 0 : index
    %26 = vector.load %arg2[%c0_9, %c0_10, %c0_11] : memref<1x1x8xf32, #tpu.memory_space<vmem>>, vector<1x1x8xf32>
    %27 = vector.shape_cast %26 : vector<1x1x8xf32> to vector<1x8xf32>
    %c0_i32 = arith.constant 0 : i32
    %28 = arith.index_cast %c0_i32 : i32 to index
    %c0_12 = arith.constant 0 : index
    %c0_13 = arith.constant 0 : index
    %29 = vector.load %arg4[%28, %c0_12, %c0_13] : memref<2x32x96xbf16, #tpu.memory_space<vmem>>, vector<1x32x96xbf16>
    %30 = vector.shape_cast %29 : vector<1x32x96xbf16> to vector<32x96xbf16>
    %31 = arith.index_cast %c0_i32 : i32 to index
    %c0_14 = arith.constant 0 : index
    %c0_15 = arith.constant 0 : index
    %32 = vector.load %arg5[%31, %c0_14, %c0_15] : memref<2x32x32xbf16, #tpu.memory_space<vmem>>, vector<1x32x32xbf16>
    %33 = vector.shape_cast %32 : vector<1x32x32xbf16> to vector<32x32xbf16>
    %34 = arith.index_cast %c0_i32 : i32 to index
    %c0_16 = arith.constant 0 : index
    %c0_17 = arith.constant 0 : index
    %35 = vector.load %arg6[%34, %c0_16, %c0_17] : memref<2x32x64xbf16, #tpu.memory_space<vmem>>, vector<1x32x64xbf16>
    %36 = vector.shape_cast %35 : vector<1x32x64xbf16> to vector<32x64xbf16>
    %37 = arith.index_cast %c0_i32 : i32 to index
    %c0_18 = arith.constant 0 : index
    %c0_19 = arith.constant 0 : index
    %38 = vector.load %arg7[%37, %c0_18, %c0_19] : memref<2x64x32xbf16, #tpu.memory_space<vmem>>, vector<1x64x32xbf16>
    %39 = vector.shape_cast %38 : vector<1x64x32xbf16> to vector<64x32xbf16>
    %40 = arith.index_cast %c0_i32 : i32 to index
    %c0_20 = arith.constant 0 : index
    %c0_21 = arith.constant 0 : index
    %41 = vector.load %arg8[%40, %c0_20, %c0_21] : memref<2x8x96xf32, #tpu.memory_space<vmem>>, vector<1x8x96xf32>
    %42 = vector.shape_cast %41 : vector<1x8x96xf32> to vector<8x96xf32>
    %43 = vector.extract_strided_slice %42 {offsets = [0, 0], sizes = [1, 96], strides = [1, 1]} : vector<8x96xf32> to vector<1x96xf32>
    %44 = vector.extract_strided_slice %42 {offsets = [1, 0], sizes = [1, 32], strides = [1, 1]} : vector<8x96xf32> to vector<1x32xf32>
    %45 = vector.extract_strided_slice %42 {offsets = [2, 0], sizes = [1, 32], strides = [1, 1]} : vector<8x96xf32> to vector<1x32xf32>
    %46 = vector.extract_strided_slice %42 {offsets = [3, 0], sizes = [1, 32], strides = [1, 1]} : vector<8x96xf32> to vector<1x32xf32>
    %47 = vector.extract_strided_slice %42 {offsets = [4, 0], sizes = [1, 64], strides = [1, 1]} : vector<8x96xf32> to vector<1x64xf32>
    %48 = vector.extract_strided_slice %42 {offsets = [5, 0], sizes = [1, 32], strides = [1, 1]} : vector<8x96xf32> to vector<1x32xf32>
    %49 = vector.extract_strided_slice %42 {offsets = [6, 0], sizes = [1, 32], strides = [1, 1]} : vector<8x96xf32> to vector<1x32xf32>
    %50 = vector.extract_strided_slice %42 {offsets = [7, 0], sizes = [1, 32], strides = [1, 1]} : vector<8x96xf32> to vector<1x32xf32>
    %51 = arith.truncf %25 : vector<8x32xf32> to vector<8x32xbf16>
    %cst_22 = arith.constant dense<0.000000e+00> : vector<8x96xf32>
    %52 = tpu.matmul %51, %30, %cst_22 {dimension_numbers = #tpu.dot_dimension_numbers<[1], [0], [0], [1], [0, 0, 1, 1], [], []>} : vector<8x32xbf16>, vector<32x96xbf16>, vector<8x96xf32> -> vector<8x96xf32>
    %53 = vector.broadcast %43 : vector<1x96xf32> to vector<8x96xf32>
    %54 = arith.addf %52, %53 : vector<8x96xf32>
    %55 = vector.extract_strided_slice %54 {offsets = [0, 0], sizes = [8, 32], strides = [1, 1]} : vector<8x96xf32> to vector<8x32xf32>
    %56 = vector.extract_strided_slice %54 {offsets = [0, 32], sizes = [8, 32], strides = [1, 1]} : vector<8x96xf32> to vector<8x32xf32>
    %57 = vector.extract_strided_slice %54 {offsets = [0, 64], sizes = [8, 32], strides = [1, 1]} : vector<8x96xf32> to vector<8x32xf32>
    %58 = vector.extract_strided_slice %55 {offsets = [0, 0], sizes = [8, 8], strides = [1, 1]} : vector<8x32xf32> to vector<8x8xf32>
    %59 = vector.extract_strided_slice %55 {offsets = [0, 8], sizes = [8, 8], strides = [1, 1]} : vector<8x32xf32> to vector<8x8xf32>
    %60 = vector.extract_strided_slice %55 {offsets = [0, 16], sizes = [8, 8], strides = [1, 1]} : vector<8x32xf32> to vector<8x8xf32>
    %61 = vector.extract_strided_slice %55 {offsets = [0, 24], sizes = [8, 8], strides = [1, 1]} : vector<8x32xf32> to vector<8x8xf32>
    %62 = vector.shape_cast %58 : vector<8x8xf32> to vector<1x8x8xf32>
    %63 = vector.shape_cast %59 : vector<8x8xf32> to vector<1x8x8xf32>
    %64 = vector.shape_cast %60 : vector<8x8xf32> to vector<1x8x8xf32>
    %65 = vector.shape_cast %61 : vector<8x8xf32> to vector<1x8x8xf32>
    %66 = tpu.concatenate %62, %63, %64, %65 in 0 : vector<1x8x8xf32>, vector<1x8x8xf32>, vector<1x8x8xf32>, vector<1x8x8xf32> -> vector<4x8x8xf32>
    %67 = vector.extract_strided_slice %56 {offsets = [0, 0], sizes = [8, 8], strides = [1, 1]} : vector<8x32xf32> to vector<8x8xf32>
    %68 = vector.extract_strided_slice %56 {offsets = [0, 8], sizes = [8, 8], strides = [1, 1]} : vector<8x32xf32> to vector<8x8xf32>
    %69 = vector.extract_strided_slice %56 {offsets = [0, 16], sizes = [8, 8], strides = [1, 1]} : vector<8x32xf32> to vector<8x8xf32>
    %70 = vector.extract_strided_slice %56 {offsets = [0, 24], sizes = [8, 8], strides = [1, 1]} : vector<8x32xf32> to vector<8x8xf32>
    %71 = vector.shape_cast %67 : vector<8x8xf32> to vector<1x8x8xf32>
    %72 = vector.shape_cast %68 : vector<8x8xf32> to vector<1x8x8xf32>
    %73 = vector.shape_cast %69 : vector<8x8xf32> to vector<1x8x8xf32>
    %74 = vector.shape_cast %70 : vector<8x8xf32> to vector<1x8x8xf32>
    %75 = tpu.concatenate %71, %72, %73, %74 in 0 : vector<1x8x8xf32>, vector<1x8x8xf32>, vector<1x8x8xf32>, vector<1x8x8xf32> -> vector<4x8x8xf32>
    %76 = vector.extract_strided_slice %57 {offsets = [0, 0], sizes = [8, 8], strides = [1, 1]} : vector<8x32xf32> to vector<8x8xf32>
    %77 = vector.extract_strided_slice %57 {offsets = [0, 8], sizes = [8, 8], strides = [1, 1]} : vector<8x32xf32> to vector<8x8xf32>
    %78 = vector.extract_strided_slice %57 {offsets = [0, 16], sizes = [8, 8], strides = [1, 1]} : vector<8x32xf32> to vector<8x8xf32>
    %79 = vector.extract_strided_slice %57 {offsets = [0, 24], sizes = [8, 8], strides = [1, 1]} : vector<8x32xf32> to vector<8x8xf32>
    %80 = vector.shape_cast %76 : vector<8x8xf32> to vector<1x8x8xf32>
    %81 = vector.shape_cast %77 : vector<8x8xf32> to vector<1x8x8xf32>
    %82 = vector.shape_cast %78 : vector<8x8xf32> to vector<1x8x8xf32>
    %83 = vector.shape_cast %79 : vector<8x8xf32> to vector<1x8x8xf32>
    %84 = tpu.concatenate %80, %81, %82, %83 in 0 : vector<1x8x8xf32>, vector<1x8x8xf32>, vector<1x8x8xf32>, vector<1x8x8xf32> -> vector<4x8x8xf32>
    "tpu.trace_start"() <{level = 10 : i32, message = "nqd,nkd->nqk"}> : () -> ()
    %cst_23 = arith.constant dense<0.000000e+00> : vector<4x8x8xf32>
    %85 = tpu.matmul %66, %75, %cst_23 {dimension_numbers = #tpu.dot_dimension_numbers<[2], [2], [1], [1], [0, 0, 0, 1, 1, 1], [0], [0]>} : vector<4x8x8xf32>, vector<4x8x8xf32>, vector<4x8x8xf32> -> vector<4x8x8xf32>
    "tpu.trace_stop"() : () -> ()
    %cst_24 = arith.constant 0.353553385 : f32
    %86 = vector.broadcast %cst_24 : f32 to vector<4x8x8xf32>
    %87 = arith.mulf %85, %86 : vector<4x8x8xf32>
    %88 = vector.shape_cast %27 : vector<1x8xf32> to vector<1x1x8xf32>
    %89 = vector.broadcast %88 : vector<1x1x8xf32> to vector<4x8x8xf32>
    %90 = arith.addf %87, %89 : vector<4x8x8xf32>
    %cst_25 = arith.constant dense<0xFF800000> : vector<4x8xf32>
    %91 = vector.multi_reduction <maximumf>, %90, %cst_25 [2] : vector<4x8x8xf32> to vector<4x8xf32>
    %92 = vector.shape_cast %91 : vector<4x8xf32> to vector<4x8x1xf32>
    %93 = vector.broadcast %92 : vector<4x8x1xf32> to vector<4x8x8xf32>
    %94 = arith.subf %90, %93 : vector<4x8x8xf32>
    %95 = math.exp %94 : vector<4x8x8xf32>
    %cst_26 = arith.constant dense<0.000000e+00> : vector<4x8xf32>
    %96 = vector.multi_reduction <add>, %95, %cst_26 [2] : vector<4x8x8xf32> to vector<4x8xf32>
    %97 = vector.shape_cast %96 : vector<4x8xf32> to vector<4x8x1xf32>
    %98 = tpu.reciprocal %97 {approx = true} : vector<4x8x1xf32> -> vector<4x8x1xf32>
    %99 = vector.broadcast %98 : vector<4x8x1xf32> to vector<4x8x8xf32>
    %100 = arith.mulf %95, %99 : vector<4x8x8xf32>
    "tpu.trace_start"() <{level = 10 : i32, message = "nqk,nkd->nqd"}> : () -> ()
    %cst_27 = arith.constant dense<0.000000e+00> : vector<4x8x8xf32>
    %101 = tpu.matmul %100, %84, %cst_27 {dimension_numbers = #tpu.dot_dimension_numbers<[2], [1], [1], [2], [0, 0, 0, 1, 1, 2], [0], [0]>} : vector<4x8x8xf32>, vector<4x8x8xf32>, vector<4x8x8xf32> -> vector<4x8x8xf32>
    "tpu.trace_stop"() : () -> ()
    %102 = vector.extract_strided_slice %101 {offsets = [0, 0, 0], sizes = [1, 8, 8], strides = [1, 1, 1]} : vector<4x8x8xf32> to vector<1x8x8xf32>
    %103 = vector.shape_cast %102 : vector<1x8x8xf32> to vector<8x8xf32>
    %104 = vector.extract_strided_slice %101 {offsets = [1, 0, 0], sizes = [1, 8, 8], strides = [1, 1, 1]} : vector<4x8x8xf32> to vector<1x8x8xf32>
    %105 = vector.shape_cast %104 : vector<1x8x8xf32> to vector<8x8xf32>
    %106 = vector.extract_strided_slice %101 {offsets = [2, 0, 0], sizes = [1, 8, 8], strides = [1, 1, 1]} : vector<4x8x8xf32> to vector<1x8x8xf32>
    %107 = vector.shape_cast %106 : vector<1x8x8xf32> to vector<8x8xf32>
    %108 = vector.extract_strided_slice %101 {offsets = [3, 0, 0], sizes = [1, 8, 8], strides = [1, 1, 1]} : vector<4x8x8xf32> to vector<1x8x8xf32>
    %109 = vector.shape_cast %108 : vector<1x8x8xf32> to vector<8x8xf32>
    %110 = tpu.concatenate %103, %105, %107, %109 in 1 : vector<8x8xf32>, vector<8x8xf32>, vector<8x8xf32>, vector<8x8xf32> -> vector<8x32xf32>
    %111 = arith.truncf %110 : vector<8x32xf32> to vector<8x32xbf16>
    %cst_28 = arith.constant dense<0.000000e+00> : vector<8x32xf32>
    %112 = tpu.matmul %111, %33, %cst_28 {dimension_numbers = #tpu.dot_dimension_numbers<[1], [0], [0], [1], [0, 0, 1, 1], [], []>} : vector<8x32xbf16>, vector<32x32xbf16>, vector<8x32xf32> -> vector<8x32xf32>
    %113 = vector.broadcast %44 : vector<1x32xf32> to vector<8x32xf32>
    %114 = arith.addf %112, %113 : vector<8x32xf32>
    %115 = arith.addf %114, %25 : vector<8x32xf32>
    %cst_29 = arith.constant dense<0.000000e+00> : vector<8xf32>
    %116 = vector.multi_reduction <add>, %115, %cst_29 [1] : vector<8x32xf32> to vector<8xf32>
    %117 = vector.shape_cast %116 : vector<8xf32> to vector<8x1xf32>
    %cst_30 = arith.constant 3.200000e+01 : f32
    %118 = vector.broadcast %cst_30 : f32 to vector<8x1xf32>
    %119 = arith.divf %117, %118 : vector<8x1xf32>
    %120 = vector.broadcast %119 : vector<8x1xf32> to vector<8x32xf32>
    %121 = arith.subf %115, %120 : vector<8x32xf32>
    %122 = arith.mulf %121, %121 : vector<8x32xf32>
    %cst_31 = arith.constant dense<0.000000e+00> : vector<8xf32>
    %123 = vector.multi_reduction <add>, %122, %cst_31 [1] : vector<8x32xf32> to vector<8xf32>
    %124 = vector.shape_cast %123 : vector<8xf32> to vector<8x1xf32>
    %cst_32 = arith.constant 3.200000e+01 : f32
    %125 = vector.broadcast %cst_32 : f32 to vector<8x1xf32>
    %126 = arith.divf %124, %125 : vector<8x1xf32>
    %127 = vector.broadcast %119 : vector<8x1xf32> to vector<8x32xf32>
    %128 = arith.subf %115, %127 : vector<8x32xf32>
    %cst_33 = arith.constant 9.99999996E-13 : f32
    %129 = vector.broadcast %cst_33 : f32 to vector<8x1xf32>
    %130 = arith.addf %126, %129 : vector<8x1xf32>
    %131 = math.rsqrt %130 : vector<8x1xf32>
    %132 = vector.broadcast %131 : vector<8x1xf32> to vector<8x32xf32>
    %133 = arith.mulf %128, %132 : vector<8x32xf32>
    %134 = vector.broadcast %45 : vector<1x32xf32> to vector<8x32xf32>
    %135 = arith.mulf %133, %134 : vector<8x32xf32>
    %136 = vector.broadcast %46 : vector<1x32xf32> to vector<8x32xf32>
    %137 = arith.addf %135, %136 : vector<8x32xf32>
    %138 = arith.truncf %137 : vector<8x32xf32> to vector<8x32xbf16>
    %cst_34 = arith.constant dense<0.000000e+00> : vector<8x64xf32>
    %139 = tpu.matmul %138, %36, %cst_34 {dimension_numbers = #tpu.dot_dimension_numbers<[1], [0], [0], [1], [0, 0, 1, 1], [], []>} : vector<8x32xbf16>, vector<32x64xbf16>, vector<8x64xf32> -> vector<8x64xf32>
    %140 = vector.broadcast %47 : vector<1x64xf32> to vector<8x64xf32>
    %141 = arith.addf %139, %140 : vector<8x64xf32>
    %142 = arith.mulf %141, %141 : vector<8x64xf32>
    %143 = arith.mulf %141, %142 : vector<8x64xf32>
    %cst_35 = arith.constant 4.471500e-02 : f32
    %144 = vector.broadcast %cst_35 : f32 to vector<8x64xf32>
    %145 = arith.mulf %144, %143 : vector<8x64xf32>
    %146 = arith.addf %141, %145 : vector<8x64xf32>
    %cst_36 = arith.constant 0.797884583 : f32
    %147 = vector.broadcast %cst_36 : f32 to vector<8x64xf32>
    %148 = arith.mulf %147, %146 : vector<8x64xf32>
    %149 = math.tanh %148 : vector<8x64xf32>
    %cst_37 = arith.constant 1.000000e+00 : f32
    %150 = vector.broadcast %cst_37 : f32 to vector<8x64xf32>
    %151 = arith.addf %150, %149 : vector<8x64xf32>
    %cst_38 = arith.constant 5.000000e-01 : f32
    %152 = vector.broadcast %cst_38 : f32 to vector<8x64xf32>
    %153 = arith.mulf %152, %151 : vector<8x64xf32>
    %154 = arith.mulf %141, %153 : vector<8x64xf32>
    %155 = arith.truncf %154 : vector<8x64xf32> to vector<8x64xbf16>
    %cst_39 = arith.constant dense<0.000000e+00> : vector<8x32xf32>
    %156 = tpu.matmul %155, %39, %cst_39 {dimension_numbers = #tpu.dot_dimension_numbers<[1], [0], [0], [1], [0, 0, 1, 1], [], []>} : vector<8x64xbf16>, vector<64x32xbf16>, vector<8x32xf32> -> vector<8x32xf32>
    %157 = vector.broadcast %48 : vector<1x32xf32> to vector<8x32xf32>
    %158 = arith.addf %156, %157 : vector<8x32xf32>
    %159 = arith.addf %158, %137 : vector<8x32xf32>
    %cst_40 = arith.constant dense<0.000000e+00> : vector<8xf32>
    %160 = vector.multi_reduction <add>, %159, %cst_40 [1] : vector<8x32xf32> to vector<8xf32>
    %161 = vector.shape_cast %160 : vector<8xf32> to vector<8x1xf32>
    %cst_41 = arith.constant 3.200000e+01 : f32
    %162 = vector.broadcast %cst_41 : f32 to vector<8x1xf32>
    %163 = arith.divf %161, %162 : vector<8x1xf32>
    %164 = vector.broadcast %163 : vector<8x1xf32> to vector<8x32xf32>
    %165 = arith.subf %159, %164 : vector<8x32xf32>
    %166 = arith.mulf %165, %165 : vector<8x32xf32>
    %cst_42 = arith.constant dense<0.000000e+00> : vector<8xf32>
    %167 = vector.multi_reduction <add>, %166, %cst_42 [1] : vector<8x32xf32> to vector<8xf32>
    %168 = vector.shape_cast %167 : vector<8xf32> to vector<8x1xf32>
    %cst_43 = arith.constant 3.200000e+01 : f32
    %169 = vector.broadcast %cst_43 : f32 to vector<8x1xf32>
    %170 = arith.divf %168, %169 : vector<8x1xf32>
    %171 = vector.broadcast %163 : vector<8x1xf32> to vector<8x32xf32>
    %172 = arith.subf %159, %171 : vector<8x32xf32>
    %cst_44 = arith.constant 9.99999996E-13 : f32
    %173 = vector.broadcast %cst_44 : f32 to vector<8x1xf32>
    %174 = arith.addf %170, %173 : vector<8x1xf32>
    %175 = math.rsqrt %174 : vector<8x1xf32>
    %176 = vector.broadcast %175 : vector<8x1xf32> to vector<8x32xf32>
    %177 = arith.mulf %172, %176 : vector<8x32xf32>
    %178 = vector.broadcast %49 : vector<1x32xf32> to vector<8x32xf32>
    %179 = arith.mulf %177, %178 : vector<8x32xf32>
    %180 = vector.broadcast %50 : vector<1x32xf32> to vector<8x32xf32>
    %181 = arith.addf %179, %180 : vector<8x32xf32>
    %c1_i32 = arith.constant 1 : i32
    %182 = arith.index_cast %c1_i32 : i32 to index
    %c0_45 = arith.constant 0 : index
    %c0_46 = arith.constant 0 : index
    %183 = vector.load %arg4[%182, %c0_45, %c0_46] : memref<2x32x96xbf16, #tpu.memory_space<vmem>>, vector<1x32x96xbf16>
    %184 = vector.shape_cast %183 : vector<1x32x96xbf16> to vector<32x96xbf16>
    %185 = arith.index_cast %c1_i32 : i32 to index
    %c0_47 = arith.constant 0 : index
    %c0_48 = arith.constant 0 : index
    %186 = vector.load %arg5[%185, %c0_47, %c0_48] : memref<2x32x32xbf16, #tpu.memory_space<vmem>>, vector<1x32x32xbf16>
    %187 = vector.shape_cast %186 : vector<1x32x32xbf16> to vector<32x32xbf16>
    %188 = arith.index_cast %c1_i32 : i32 to index
    %c0_49 = arith.constant 0 : index
    %c0_50 = arith.constant 0 : index
    %189 = vector.load %arg6[%188, %c0_49, %c0_50] : memref<2x32x64xbf16, #tpu.memory_space<vmem>>, vector<1x32x64xbf16>
    %190 = vector.shape_cast %189 : vector<1x32x64xbf16> to vector<32x64xbf16>
    %191 = arith.index_cast %c1_i32 : i32 to index
    %c0_51 = arith.constant 0 : index
    %c0_52 = arith.constant 0 : index
    %192 = vector.load %arg7[%191, %c0_51, %c0_52] : memref<2x64x32xbf16, #tpu.memory_space<vmem>>, vector<1x64x32xbf16>
    %193 = vector.shape_cast %192 : vector<1x64x32xbf16> to vector<64x32xbf16>
    %194 = arith.index_cast %c1_i32 : i32 to index
    %c0_53 = arith.constant 0 : index
    %c0_54 = arith.constant 0 : index
    %195 = vector.load %arg8[%194, %c0_53, %c0_54] : memref<2x8x96xf32, #tpu.memory_space<vmem>>, vector<1x8x96xf32>
    %196 = vector.shape_cast %195 : vector<1x8x96xf32> to vector<8x96xf32>
    %197 = vector.extract_strided_slice %196 {offsets = [0, 0], sizes = [1, 96], strides = [1, 1]} : vector<8x96xf32> to vector<1x96xf32>
    %198 = vector.extract_strided_slice %196 {offsets = [1, 0], sizes = [1, 32], strides = [1, 1]} : vector<8x96xf32> to vector<1x32xf32>
    %199 = vector.extract_strided_slice %196 {offsets = [2, 0], sizes = [1, 32], strides = [1, 1]} : vector<8x96xf32> to vector<1x32xf32>
    %200 = vector.extract_strided_slice %196 {offsets = [3, 0], sizes = [1, 32], strides = [1, 1]} : vector<8x96xf32> to vector<1x32xf32>
    %201 = vector.extract_strided_slice %196 {offsets = [4, 0], sizes = [1, 64], strides = [1, 1]} : vector<8x96xf32> to vector<1x64xf32>
    %202 = vector.extract_strided_slice %196 {offsets = [5, 0], sizes = [1, 32], strides = [1, 1]} : vector<8x96xf32> to vector<1x32xf32>
    %203 = vector.extract_strided_slice %196 {offsets = [6, 0], sizes = [1, 32], strides = [1, 1]} : vector<8x96xf32> to vector<1x32xf32>
    %204 = vector.extract_strided_slice %196 {offsets = [7, 0], sizes = [1, 32], strides = [1, 1]} : vector<8x96xf32> to vector<1x32xf32>
    %205 = arith.truncf %181 : vector<8x32xf32> to vector<8x32xbf16>
    %cst_55 = arith.constant dense<0.000000e+00> : vector<8x96xf32>
    %206 = tpu.matmul %205, %184, %cst_55 {dimension_numbers = #tpu.dot_dimension_numbers<[1], [0], [0], [1], [0, 0, 1, 1], [], []>} : vector<8x32xbf16>, vector<32x96xbf16>, vector<8x96xf32> -> vector<8x96xf32>
    %207 = vector.broadcast %197 : vector<1x96xf32> to vector<8x96xf32>
    %208 = arith.addf %206, %207 : vector<8x96xf32>
    %209 = vector.extract_strided_slice %208 {offsets = [0, 0], sizes = [8, 32], strides = [1, 1]} : vector<8x96xf32> to vector<8x32xf32>
    %210 = vector.extract_strided_slice %208 {offsets = [0, 32], sizes = [8, 32], strides = [1, 1]} : vector<8x96xf32> to vector<8x32xf32>
    %211 = vector.extract_strided_slice %208 {offsets = [0, 64], sizes = [8, 32], strides = [1, 1]} : vector<8x96xf32> to vector<8x32xf32>
    %212 = vector.extract_strided_slice %209 {offsets = [0, 0], sizes = [8, 8], strides = [1, 1]} : vector<8x32xf32> to vector<8x8xf32>
    %213 = vector.extract_strided_slice %209 {offsets = [0, 8], sizes = [8, 8], strides = [1, 1]} : vector<8x32xf32> to vector<8x8xf32>
    %214 = vector.extract_strided_slice %209 {offsets = [0, 16], sizes = [8, 8], strides = [1, 1]} : vector<8x32xf32> to vector<8x8xf32>
    %215 = vector.extract_strided_slice %209 {offsets = [0, 24], sizes = [8, 8], strides = [1, 1]} : vector<8x32xf32> to vector<8x8xf32>
    %216 = vector.shape_cast %212 : vector<8x8xf32> to vector<1x8x8xf32>
    %217 = vector.shape_cast %213 : vector<8x8xf32> to vector<1x8x8xf32>
    %218 = vector.shape_cast %214 : vector<8x8xf32> to vector<1x8x8xf32>
    %219 = vector.shape_cast %215 : vector<8x8xf32> to vector<1x8x8xf32>
    %220 = tpu.concatenate %216, %217, %218, %219 in 0 : vector<1x8x8xf32>, vector<1x8x8xf32>, vector<1x8x8xf32>, vector<1x8x8xf32> -> vector<4x8x8xf32>
    %221 = vector.extract_strided_slice %210 {offsets = [0, 0], sizes = [8, 8], strides = [1, 1]} : vector<8x32xf32> to vector<8x8xf32>
    %222 = vector.extract_strided_slice %210 {offsets = [0, 8], sizes = [8, 8], strides = [1, 1]} : vector<8x32xf32> to vector<8x8xf32>
    %223 = vector.extract_strided_slice %210 {offsets = [0, 16], sizes = [8, 8], strides = [1, 1]} : vector<8x32xf32> to vector<8x8xf32>
    %224 = vector.extract_strided_slice %210 {offsets = [0, 24], sizes = [8, 8], strides = [1, 1]} : vector<8x32xf32> to vector<8x8xf32>
    %225 = vector.shape_cast %221 : vector<8x8xf32> to vector<1x8x8xf32>
    %226 = vector.shape_cast %222 : vector<8x8xf32> to vector<1x8x8xf32>
    %227 = vector.shape_cast %223 : vector<8x8xf32> to vector<1x8x8xf32>
    %228 = vector.shape_cast %224 : vector<8x8xf32> to vector<1x8x8xf32>
    %229 = tpu.concatenate %225, %226, %227, %228 in 0 : vector<1x8x8xf32>, vector<1x8x8xf32>, vector<1x8x8xf32>, vector<1x8x8xf32> -> vector<4x8x8xf32>
    %230 = vector.extract_strided_slice %211 {offsets = [0, 0], sizes = [8, 8], strides = [1, 1]} : vector<8x32xf32> to vector<8x8xf32>
    %231 = vector.extract_strided_slice %211 {offsets = [0, 8], sizes = [8, 8], strides = [1, 1]} : vector<8x32xf32> to vector<8x8xf32>
    %232 = vector.extract_strided_slice %211 {offsets = [0, 16], sizes = [8, 8], strides = [1, 1]} : vector<8x32xf32> to vector<8x8xf32>
    %233 = vector.extract_strided_slice %211 {offsets = [0, 24], sizes = [8, 8], strides = [1, 1]} : vector<8x32xf32> to vector<8x8xf32>
    %234 = vector.shape_cast %230 : vector<8x8xf32> to vector<1x8x8xf32>
    %235 = vector.shape_cast %231 : vector<8x8xf32> to vector<1x8x8xf32>
    %236 = vector.shape_cast %232 : vector<8x8xf32> to vector<1x8x8xf32>
    %237 = vector.shape_cast %233 : vector<8x8xf32> to vector<1x8x8xf32>
    %238 = tpu.concatenate %234, %235, %236, %237 in 0 : vector<1x8x8xf32>, vector<1x8x8xf32>, vector<1x8x8xf32>, vector<1x8x8xf32> -> vector<4x8x8xf32>
    "tpu.trace_start"() <{level = 10 : i32, message = "nqd,nkd->nqk"}> : () -> ()
    %cst_56 = arith.constant dense<0.000000e+00> : vector<4x8x8xf32>
    %239 = tpu.matmul %220, %229, %cst_56 {dimension_numbers = #tpu.dot_dimension_numbers<[2], [2], [1], [1], [0, 0, 0, 1, 1, 1], [0], [0]>} : vector<4x8x8xf32>, vector<4x8x8xf32>, vector<4x8x8xf32> -> vector<4x8x8xf32>
    "tpu.trace_stop"() : () -> ()
    %cst_57 = arith.constant 0.353553385 : f32
    %240 = vector.broadcast %cst_57 : f32 to vector<4x8x8xf32>
    %241 = arith.mulf %239, %240 : vector<4x8x8xf32>
    %242 = vector.shape_cast %27 : vector<1x8xf32> to vector<1x1x8xf32>
    %243 = vector.broadcast %242 : vector<1x1x8xf32> to vector<4x8x8xf32>
    %244 = arith.addf %241, %243 : vector<4x8x8xf32>
    %cst_58 = arith.constant dense<0xFF800000> : vector<4x8xf32>
    %245 = vector.multi_reduction <maximumf>, %244, %cst_58 [2] : vector<4x8x8xf32> to vector<4x8xf32>
    %246 = vector.shape_cast %245 : vector<4x8xf32> to vector<4x8x1xf32>
    %247 = vector.broadcast %246 : vector<4x8x1xf32> to vector<4x8x8xf32>
    %248 = arith.subf %244, %247 : vector<4x8x8xf32>
    %249 = math.exp %248 : vector<4x8x8xf32>
    %cst_59 = arith.constant dense<0.000000e+00> : vector<4x8xf32>
    %250 = vector.multi_reduction <add>, %249, %cst_59 [2] : vector<4x8x8xf32> to vector<4x8xf32>
    %251 = vector.shape_cast %250 : vector<4x8xf32> to vector<4x8x1xf32>
    %252 = tpu.reciprocal %251 {approx = true} : vector<4x8x1xf32> -> vector<4x8x1xf32>
    %253 = vector.broadcast %252 : vector<4x8x1xf32> to vector<4x8x8xf32>
    %254 = arith.mulf %249, %253 : vector<4x8x8xf32>
    "tpu.trace_start"() <{level = 10 : i32, message = "nqk,nkd->nqd"}> : () -> ()
    %cst_60 = arith.constant dense<0.000000e+00> : vector<4x8x8xf32>
    %255 = tpu.matmul %254, %238, %cst_60 {dimension_numbers = #tpu.dot_dimension_numbers<[2], [1], [1], [2], [0, 0, 0, 1, 1, 2], [0], [0]>} : vector<4x8x8xf32>, vector<4x8x8xf32>, vector<4x8x8xf32> -> vector<4x8x8xf32>
    "tpu.trace_stop"() : () -> ()
    %256 = vector.extract_strided_slice %255 {offsets = [0, 0, 0], sizes = [1, 8, 8], strides = [1, 1, 1]} : vector<4x8x8xf32> to vector<1x8x8xf32>
    %257 = vector.shape_cast %256 : vector<1x8x8xf32> to vector<8x8xf32>
    %258 = vector.extract_strided_slice %255 {offsets = [1, 0, 0], sizes = [1, 8, 8], strides = [1, 1, 1]} : vector<4x8x8xf32> to vector<1x8x8xf32>
    %259 = vector.shape_cast %258 : vector<1x8x8xf32> to vector<8x8xf32>
    %260 = vector.extract_strided_slice %255 {offsets = [2, 0, 0], sizes = [1, 8, 8], strides = [1, 1, 1]} : vector<4x8x8xf32> to vector<1x8x8xf32>
    %261 = vector.shape_cast %260 : vector<1x8x8xf32> to vector<8x8xf32>
    %262 = vector.extract_strided_slice %255 {offsets = [3, 0, 0], sizes = [1, 8, 8], strides = [1, 1, 1]} : vector<4x8x8xf32> to vector<1x8x8xf32>
    %263 = vector.shape_cast %262 : vector<1x8x8xf32> to vector<8x8xf32>
    %264 = tpu.concatenate %257, %259, %261, %263 in 1 : vector<8x8xf32>, vector<8x8xf32>, vector<8x8xf32>, vector<8x8xf32> -> vector<8x32xf32>
    %265 = arith.truncf %264 : vector<8x32xf32> to vector<8x32xbf16>
    %cst_61 = arith.constant dense<0.000000e+00> : vector<8x32xf32>
    %266 = tpu.matmul %265, %187, %cst_61 {dimension_numbers = #tpu.dot_dimension_numbers<[1], [0], [0], [1], [0, 0, 1, 1], [], []>} : vector<8x32xbf16>, vector<32x32xbf16>, vector<8x32xf32> -> vector<8x32xf32>
    %267 = vector.broadcast %198 : vector<1x32xf32> to vector<8x32xf32>
    %268 = arith.addf %266, %267 : vector<8x32xf32>
    %269 = arith.addf %268, %181 : vector<8x32xf32>
    %cst_62 = arith.constant dense<0.000000e+00> : vector<8xf32>
    %270 = vector.multi_reduction <add>, %269, %cst_62 [1] : vector<8x32xf32> to vector<8xf32>
    %271 = vector.shape_cast %270 : vector<8xf32> to vector<8x1xf32>
    %cst_63 = arith.constant 3.200000e+01 : f32
    %272 = vector.broadcast %cst_63 : f32 to vector<8x1xf32>
    %273 = arith.divf %271, %272 : vector<8x1xf32>
    %274 = vector.broadcast %273 : vector<8x1xf32> to vector<8x32xf32>
    %275 = arith.subf %269, %274 : vector<8x32xf32>
    %276 = arith.mulf %275, %275 : vector<8x32xf32>
    %cst_64 = arith.constant dense<0.000000e+00> : vector<8xf32>
    %277 = vector.multi_reduction <add>, %276, %cst_64 [1] : vector<8x32xf32> to vector<8xf32>
    %278 = vector.shape_cast %277 : vector<8xf32> to vector<8x1xf32>
    %cst_65 = arith.constant 3.200000e+01 : f32
    %279 = vector.broadcast %cst_65 : f32 to vector<8x1xf32>
    %280 = arith.divf %278, %279 : vector<8x1xf32>
    %281 = vector.broadcast %273 : vector<8x1xf32> to vector<8x32xf32>
    %282 = arith.subf %269, %281 : vector<8x32xf32>
    %cst_66 = arith.constant 9.99999996E-13 : f32
    %283 = vector.broadcast %cst_66 : f32 to vector<8x1xf32>
    %284 = arith.addf %280, %283 : vector<8x1xf32>
    %285 = math.rsqrt %284 : vector<8x1xf32>
    %286 = vector.broadcast %285 : vector<8x1xf32> to vector<8x32xf32>
    %287 = arith.mulf %282, %286 : vector<8x32xf32>
    %288 = vector.broadcast %199 : vector<1x32xf32> to vector<8x32xf32>
    %289 = arith.mulf %287, %288 : vector<8x32xf32>
    %290 = vector.broadcast %200 : vector<1x32xf32> to vector<8x32xf32>
    %291 = arith.addf %289, %290 : vector<8x32xf32>
    %292 = arith.truncf %291 : vector<8x32xf32> to vector<8x32xbf16>
    %cst_67 = arith.constant dense<0.000000e+00> : vector<8x64xf32>
    %293 = tpu.matmul %292, %190, %cst_67 {dimension_numbers = #tpu.dot_dimension_numbers<[1], [0], [0], [1], [0, 0, 1, 1], [], []>} : vector<8x32xbf16>, vector<32x64xbf16>, vector<8x64xf32> -> vector<8x64xf32>
    %294 = vector.broadcast %201 : vector<1x64xf32> to vector<8x64xf32>
    %295 = arith.addf %293, %294 : vector<8x64xf32>
    %296 = arith.mulf %295, %295 : vector<8x64xf32>
    %297 = arith.mulf %295, %296 : vector<8x64xf32>
    %cst_68 = arith.constant 4.471500e-02 : f32
    %298 = vector.broadcast %cst_68 : f32 to vector<8x64xf32>
    %299 = arith.mulf %298, %297 : vector<8x64xf32>
    %300 = arith.addf %295, %299 : vector<8x64xf32>
    %cst_69 = arith.constant 0.797884583 : f32
    %301 = vector.broadcast %cst_69 : f32 to vector<8x64xf32>
    %302 = arith.mulf %301, %300 : vector<8x64xf32>
    %303 = math.tanh %302 : vector<8x64xf32>
    %cst_70 = arith.constant 1.000000e+00 : f32
    %304 = vector.broadcast %cst_70 : f32 to vector<8x64xf32>
    %305 = arith.addf %304, %303 : vector<8x64xf32>
    %cst_71 = arith.constant 5.000000e-01 : f32
    %306 = vector.broadcast %cst_71 : f32 to vector<8x64xf32>
    %307 = arith.mulf %306, %305 : vector<8x64xf32>
    %308 = arith.mulf %295, %307 : vector<8x64xf32>
    %309 = arith.truncf %308 : vector<8x64xf32> to vector<8x64xbf16>
    %cst_72 = arith.constant dense<0.000000e+00> : vector<8x32xf32>
    %310 = tpu.matmul %309, %193, %cst_72 {dimension_numbers = #tpu.dot_dimension_numbers<[1], [0], [0], [1], [0, 0, 1, 1], [], []>} : vector<8x64xbf16>, vector<64x32xbf16>, vector<8x32xf32> -> vector<8x32xf32>
    %311 = vector.broadcast %202 : vector<1x32xf32> to vector<8x32xf32>
    %312 = arith.addf %310, %311 : vector<8x32xf32>
    %313 = arith.addf %312, %291 : vector<8x32xf32>
    %cst_73 = arith.constant dense<0.000000e+00> : vector<8xf32>
    %314 = vector.multi_reduction <add>, %313, %cst_73 [1] : vector<8x32xf32> to vector<8xf32>
    %315 = vector.shape_cast %314 : vector<8xf32> to vector<8x1xf32>
    %cst_74 = arith.constant 3.200000e+01 : f32
    %316 = vector.broadcast %cst_74 : f32 to vector<8x1xf32>
    %317 = arith.divf %315, %316 : vector<8x1xf32>
    %318 = vector.broadcast %317 : vector<8x1xf32> to vector<8x32xf32>
    %319 = arith.subf %313, %318 : vector<8x32xf32>
    %320 = arith.mulf %319, %319 : vector<8x32xf32>
    %cst_75 = arith.constant dense<0.000000e+00> : vector<8xf32>
    %321 = vector.multi_reduction <add>, %320, %cst_75 [1] : vector<8x32xf32> to vector<8xf32>
    %322 = vector.shape_cast %321 : vector<8xf32> to vector<8x1xf32>
    %cst_76 = arith.constant 3.200000e+01 : f32
    %323 = vector.broadcast %cst_76 : f32 to vector<8x1xf32>
    %324 = arith.divf %322, %323 : vector<8x1xf32>
    %325 = vector.broadcast %317 : vector<8x1xf32> to vector<8x32xf32>
    %326 = arith.subf %313, %325 : vector<8x32xf32>
    %cst_77 = arith.constant 9.99999996E-13 : f32
    %327 = vector.broadcast %cst_77 : f32 to vector<8x1xf32>
    %328 = arith.addf %324, %327 : vector<8x1xf32>
    %329 = math.rsqrt %328 : vector<8x1xf32>
    %330 = vector.broadcast %329 : vector<8x1xf32> to vector<8x32xf32>
    %331 = arith.mulf %326, %330 : vector<8x32xf32>
    %332 = vector.broadcast %203 : vector<1x32xf32> to vector<8x32xf32>
    %333 = arith.mulf %331, %332 : vector<8x32xf32>
    %334 = vector.broadcast %204 : vector<1x32xf32> to vector<8x32xf32>
    %335 = arith.addf %333, %334 : vector<8x32xf32>
    %c2_i32 = arith.constant 2 : i32
    %336 = vector.extract_strided_slice %335 {offsets = [0, 0], sizes = [2, 32], strides = [1, 1]} : vector<8x32xf32> to vector<2x32xf32>
    %c0_78 = arith.constant 0 : index
    %c0_79 = arith.constant 0 : index
    %c0_80 = arith.constant 0 : index
    %337 = vector.load %arg9[%c0_78, %c0_79, %c0_80] : memref<1x2x32xf32, #tpu.memory_space<vmem>>, vector<1x2x32xf32>
    %338 = vector.shape_cast %337 : vector<1x2x32xf32> to vector<2x32xf32>
    %339 = vector.shape_cast %336 : vector<2x32xf32> to vector<1x2x32xf32>
    tpu.vector_store %arg9[%c0_78, %c0_79, %c0_80], %339 {strides = array<i32>} : memref<1x2x32xf32, #tpu.memory_space<vmem>>, vector<1x2x32xf32>,
    return
  }
  func.func @transform_0(%arg0: i32) -> (i32, i32, i32) {
    %c0_i32 = arith.constant 0 : i32
    %c0_i32_0 = arith.constant 0 : i32
    %c0_i32_1 = arith.constant 0 : i32
    return %arg0, %c0_i32, %c0_i32_0 : i32, i32, i32
  }
  func.func @transform_1(%arg0: i32) -> (i32, i32, i32) {
    %c0_i32 = arith.constant 0 : i32
    %c0_i32_0 = arith.constant 0 : i32
    %c0_i32_1 = arith.constant 0 : i32
    return %arg0, %c0_i32, %c0_i32_0 : i32, i32, i32
  }
  func.func @transform_2(%arg0: i32) -> (i32, i32) {
    %c0_i32 = arith.constant 0 : i32
    %c0_i32_0 = arith.constant 0 : i32
    %c0_i32_1 = arith.constant 0 : i32
    return %c0_i32, %c0_i32_0 : i32, i32
  }
  func.func @transform_3(%arg0: i32) -> (i32, i32, i32) {
    %c0_i32 = arith.constant 0 : i32
    %c0_i32_0 = arith.constant 0 : i32
    %c0_i32_1 = arith.constant 0 : i32
    %c0_i32_2 = arith.constant 0 : i32
    return %c0_i32, %c0_i32_0, %c0_i32_1 : i32, i32, i32
  }
  func.func @transform_4(%arg0: i32) -> (i32, i32, i32) {
    %c0_i32 = arith.constant 0 : i32
    %c0_i32_0 = arith.constant 0 : i32
    %c0_i32_1 = arith.constant 0 : i32
    %c0_i32_2 = arith.constant 0 : i32
    return %c0_i32, %c0_i32_0, %c0_i32_1 : i32, i32, i32
  }
  func.func @transform_5(%arg0: i32) -> (i32, i32, i32) {
    %c0_i32 = arith.constant 0 : i32
    %c0_i32_0 = arith.constant 0 : i32
    %c0_i32_1 = arith.constant 0 : i32
    %c0_i32_2 = arith.constant 0 : i32
    return %c0_i32, %c0_i32_0, %c0_i32_1 : i32, i32, i32
  }
  func.func @transform_6(%arg0: i32) -> (i32, i32, i32) {
    %c0_i32 = arith.constant 0 : i32
    %c0_i32_0 = arith.constant 0 : i32
    %c0_i32_1 = arith.constant 0 : i32
    %c0_i32_2 = arith.constant 0 : i32
    return %c0_i32, %c0_i32_0, %c0_i32_1 : i32, i32, i32
  }
  func.func @transform_7(%arg0: i32) -> (i32, i32, i32) {
    %c0_i32 = arith.constant 0 : i32
    %c0_i32_0 = arith.constant 0 : i32
    %c0_i32_1 = arith.constant 0 : i32
    %c0_i32_2 = arith.constant 0 : i32
    return %c0_i32, %c0_i32_0, %c0_i32_1 : i32, i32, i32
  }
  func.func @transform_8(%arg0: i32) -> (i32, i32, i32) {
    %c0_i32 = arith.constant 0 : i32
    %c0_i32_0 = arith.constant 0 : i32
    %c0_i32_1 = arith.constant 0 : i32
    return %arg0, %c0_i32, %c0_i32_0 : i32, i32, i32
  }
}

</mosaic_0001>

<llo_original>
// kernel: siamese_bert_forward.1
$region0: #{siamese_bert_forward.1}
  #allocation0 [shape = 'u32[]', space=smem, size = 0x4, offset = 0x4, fixed_abs, tag = 'smem constant byte address 0x4 - core index']
  #allocation1 [shape = 'u32[144,128]{1,0:T(1,128)}', space=vmem, size = 0x12000, scoped, tag = 'internal scratch']
  %s0 = inlined_call_operand.vmem [shape: f32[2,8,32], index: 0, kind: input, shape index: {}]
  %s1 = inlined_call_operand.vmem [shape: f32[2,1,8], index: 1, kind: input, shape index: {}]
  %s2 = inlined_call_operand.vmem [shape: f32[2,32], index: 2, kind: input, shape index: {}]
  %s3 = inlined_call_operand.vmem [shape: bf16[2,32,96], index: 3, kind: input, shape index: {}]
  %s4 = inlined_call_operand.vmem [shape: bf16[2,32,32], index: 4, kind: input, shape index: {}]
  %s5 = inlined_call_operand.vmem [shape: bf16[2,32,64], index: 5, kind: input, shape index: {}]
  %s6 = inlined_call_operand.vmem [shape: bf16[2,64,32], index: 6, kind: input, shape index: {}]
  %s7 = inlined_call_operand.vmem [shape: f32[2,8,96], index: 7, kind: input, shape index: {}]
  %s8 = inlined_call_operand.vmem [shape: f32[2,2,32], index: 8, kind: output, shape index: {}]
  %s9 = sld [smem:[#allocation0]]
  $region65: #{siamese_bert_forward.1} parent=0
    _
  %s11 = ssub.s32 1, %s9
  %s12 = scalar_select 0, %s11, %s9
  loop: start=0, step=1, limit=4
  $region2: #{siamese_bert_forward.1} parent=0 // loop_pre_header
    _
  $region3: #{siamese_bert_forward.1} parent=0 // loop_header
    %s14 = sphi 0, %s18
    %p15 = scmp.ge.s32.totalorder %s14, 4
    %s24 = sphi 0, %s26
    %s27 = sphi 0, %s24
    %s28 = sphi 0, %s27
    %s44 = sphi 0, %s28
    %s50 = sphi 0, %s52
    %s53 = sphi 0, %s50
    %s54 = sphi 0, %s53
    %s70 = sphi 0, %s54
    %s74 = sphi 0, %s74
    %s76 = sphi 0, %s74
    %s77 = sphi 0, %s76
    %s91 = sphi 0, %s77
    %s95 = sphi 0, %s95
    %s97 = sphi 0, %s95
    %s98 = sphi 0, %s97
    %s112 = sphi 0, %s98
    %s116 = sphi 0, %s116
    %s118 = sphi 0, %s116
    %s119 = sphi 0, %s118
    %s133 = sphi 0, %s119
    %s137 = sphi 0, %s137
    %s139 = sphi 0, %s137
    %s140 = sphi 0, %s139
    %s154 = sphi 0, %s140
    %s158 = sphi 0, %s158
    %s160 = sphi 0, %s158
    %s161 = sphi 0, %s160
    %s175 = sphi 0, %s161
    %s179 = sphi 0, %s179
    %s181 = sphi 0, %s179
    %s182 = sphi 0, %s181
    %s196 = sphi 0, %s182
    %s202 = sphi 0, %s204
    %s205 = sphi 0, %s202
    %s206 = sphi 0, %s205
    %s222 = sphi 0, %s206
  $region4: #{siamese_bert_forward.1} parent=0 // loop_header_branch
    %17 = sbr.rel (%p15) target = $region8
  $region5: #{siamese_bert_forward.1} parent=0 // loop_body
    %s19 = ssub.s32 %s14, 1
    %s20 = ssub.s32 %s14, 2
    %s21 = sadd.s32 %s14, 1
    %s22 = ssub.s32 %s14, %s21
    %p23 = scmp.eq.s32.totalorder %s22, 0
    %s25 = sadd.s32 %s24, 1
    %s26 = scalar_select %p23, %s24, %s25
    %p29 = pneg %p23
    %p30 = scmp.eq.s32.totalorder %s14, 1
    %p31 = por %p29, %p30
    %p32 = scmp.ne.s32.totalorder %s24, %s27
    %p33 = scmp.eq.s32.totalorder %s14, 0
    %p34 = por %p32, %p33
    %p35 = scmp.ne.s32.totalorder %s24, %s27
    %p36 = scmp.eq.s32.totalorder %s19, 1
    %p37 = por %p35, %p36
    %p38 = scmp.ne.s32.totalorder %s27, %s28
    %p39 = scmp.eq.s32.totalorder %s19, 0
    %p40 = por %p38, %p39
    %p41 = scmp.ne.s32.totalorder %s27, %s28
    %p42 = scmp.eq.s32.totalorder %s20, 1
    %p43 = por %p41, %p42
    %p45 = scmp.ne.s32.totalorder %s28, %s44
    %p46 = scmp.eq.s32.totalorder %s20, 0
    %p47 = por %p45, %p46
    %s48 = ssub.s32 %s14, %s21
    %p49 = scmp.eq.s32.totalorder %s48, 0
    %s51 = sadd.s32 %s50, 1
    %s52 = scalar_select %p49, %s50, %s51
    %p55 = pneg %p49
    %p56 = scmp.eq.s32.totalorder %s14, 1
    %p57 = por %p55, %p56
    %p58 = scmp.ne.s32.totalorder %s50, %s53
    %p59 = scmp.eq.s32.totalorder %s14, 0
    %p60 = por %p58, %p59
    %p61 = scmp.ne.s32.totalorder %s50, %s53
    %p62 = scmp.eq.s32.totalorder %s19, 1
    %p63 = por %p61, %p62
    %p64 = scmp.ne.s32.totalorder %s53, %s54
    %p65 = scmp.eq.s32.totalorder %s19, 0
    %p66 = por %p64, %p65
    %p67 = scmp.ne.s32.totalorder %s53, %s54
    %p68 = scmp.eq.s32.totalorder %s20, 1
    %p69 = por %p67, %p68
    %p71 = scmp.ne.s32.totalorder %s54, %s70
    %p72 = scmp.eq.s32.totalorder %s20, 0
    %p73 = por %p71, %p72
    %s75 = sadd.s32 %s74, 1
    %p78 = scmp.eq.s32.totalorder %s14, 1
    %p79 = scmp.ne.s32.totalorder %s74, %s76
    %p80 = scmp.eq.s32.totalorder %s14, 0
    %p81 = por %p79, %p80
    %p82 = scmp.ne.s32.totalorder %s74, %s76
    %p83 = scmp.eq.s32.totalorder %s19, 1
    %p84 = por %p82, %p83
    %p85 = scmp.ne.s32.totalorder %s76, %s77
    %p86 = scmp.eq.s32.totalorder %s19, 0
    %p87 = por %p85, %p86
    %p88 = scmp.ne.s32.totalorder %s76, %s77
    %p89 = scmp.eq.s32.totalorder %s20, 1
    %p90 = por %p88, %p89
    %p92 = scmp.ne.s32.totalorder %s77, %s91
    %p93 = scmp.eq.s32.totalorder %s20, 0
    %p94 = por %p92, %p93
    %s96 = sadd.s32 %s95, 1
    %p99 = scmp.eq.s32.totalorder %s14, 1
    %p100 = scmp.ne.s32.totalorder %s95, %s97
    %p101 = scmp.eq.s32.totalorder %s14, 0
    %p102 = por %p100, %p101
    %p103 = scmp.ne.s32.totalorder %s95, %s97
    %p104 = scmp.eq.s32.totalorder %s19, 1
    %p105 = por %p103, %p104
    %p106 = scmp.ne.s32.totalorder %s97, %s98
    %p107 = scmp.eq.s32.totalorder %s19, 0
    %p108 = por %p106, %p107
    %p109 = scmp.ne.s32.totalorder %s97, %s98
    %p110 = scmp.eq.s32.totalorder %s20, 1
    %p111 = por %p109, %p110
    %p113 = scmp.ne.s32.totalorder %s98, %s112
    %p114 = scmp.eq.s32.totalorder %s20, 0
    %p115 = por %p113, %p114
    %s117 = sadd.s32 %s116, 1
    %p120 = scmp.eq.s32.totalorder %s14, 1
    %p121 = scmp.ne.s32.totalorder %s116, %s118
    %p122 = scmp.eq.s32.totalorder %s14, 0
    %p123 = por %p121, %p122
    %p124 = scmp.ne.s32.totalorder %s116, %s118
    %p125 = scmp.eq.s32.totalorder %s19, 1
    %p126 = por %p124, %p125
    %p127 = scmp.ne.s32.totalorder %s118, %s119
    %p128 = scmp.eq.s32.totalorder %s19, 0
    %p129 = por %p127, %p128
    %p130 = scmp.ne.s32.totalorder %s118, %s119
    %p131 = scmp.eq.s32.totalorder %s20, 1
    %p132 = por %p130, %p131
    %p134 = scmp.ne.s32.totalorder %s119, %s133
    %p135 = scmp.eq.s32.totalorder %s20, 0
    %p136 = por %p134, %p135
    %s138 = sadd.s32 %s137, 1
    %p141 = scmp.eq.s32.totalorder %s14, 1
    %p142 = scmp.ne.s32.totalorder %s137, %s139
    %p143 = scmp.eq.s32.totalorder %s14, 0
    %p144 = por %p142, %p143
    %p145 = scmp.ne.s32.totalorder %s137, %s139
    %p146 = scmp.eq.s32.totalorder %s19, 1
    %p147 = por %p145, %p146
    %p148 = scmp.ne.s32.totalorder %s139, %s140
    %p149 = scmp.eq.s32.totalorder %s19, 0
    %p150 = por %p148, %p149
    %p151 = scmp.ne.s32.totalorder %s139, %s140
    %p152 = scmp.eq.s32.totalorder %s20, 1
    %p153 = por %p151, %p152
    %p155 = scmp.ne.s32.totalorder %s140, %s154
    %p156 = scmp.eq.s32.totalorder %s20, 0
    %p157 = por %p155, %p156
    %s159 = sadd.s32 %s158, 1
    %p162 = scmp.eq.s32.totalorder %s14, 1
    %p163 = scmp.ne.s32.totalorder %s158, %s160
    %p164 = scmp.eq.s32.totalorder %s14, 0
    %p165 = por %p163, %p164
    %p166 = scmp.ne.s32.totalorder %s158, %s160
    %p167 = scmp.eq.s32.totalorder %s19, 1
    %p168 = por %p166, %p167
    %p169 = scmp.ne.s32.totalorder %s160, %s161
    %p170 = scmp.eq.s32.totalorder %s19, 0
    %p171 = por %p169, %p170
    %p172 = scmp.ne.s32.totalorder %s160, %s161
    %p173 = scmp.eq.s32.totalorder %s20, 1
    %p174 = por %p172, %p173
    %p176 = scmp.ne.s32.totalorder %s161, %s175
    %p177 = scmp.eq.s32.totalorder %s20, 0
    %p178 = por %p176, %p177
    %s180 = sadd.s32 %s179, 1
    %p183 = scmp.eq.s32.totalorder %s14, 1
    %p184 = scmp.ne.s32.totalorder %s179, %s181
    %p185 = scmp.eq.s32.totalorder %s14, 0
    %p186 = por %p184, %p185
    %p187 = scmp.ne.s32.totalorder %s179, %s181
    %p188 = scmp.eq.s32.totalorder %s19, 1
    %p189 = por %p187, %p188
    %p190 = scmp.ne.s32.totalorder %s181, %s182
    %p191 = scmp.eq.s32.totalorder %s19, 0
    %p192 = por %p190, %p191
    %p193 = scmp.ne.s32.totalorder %s181, %s182
    %p194 = scmp.eq.s32.totalorder %s20, 1
    %p195 = por %p193, %p194
    %p197 = scmp.ne.s32.totalorder %s182, %s196
    %p198 = scmp.eq.s32.totalorder %s20, 0
    %p199 = por %p197, %p198
    %s200 = ssub.s32 %s14, %s21
    %p201 = scmp.eq.s32.totalorder %s200, 0
    %s203 = sadd.s32 %s202, 1
    %s204 = scalar_select %p201, %s202, %s203
    %p207 = pneg %p201
    %p208 = scmp.eq.s32.totalorder %s14, 1
    %p209 = por %p207, %p208
    %p210 = scmp.ne.s32.totalorder %s202, %s205
    %p211 = scmp.eq.s32.totalorder %s14, 0
    %p212 = por %p210, %p211
    %p213 = scmp.ne.s32.totalorder %s202, %s205
    %p214 = scmp.eq.s32.totalorder %s19, 1
    %p215 = por %p213, %p214
    %p216 = scmp.ne.s32.totalorder %s205, %s206
    %p217 = scmp.eq.s32.totalorder %s19, 0
    %p218 = por %p216, %p217
    %p219 = scmp.ne.s32.totalorder %s205, %s206
    %p220 = scmp.eq.s32.totalorder %s20, 1
    %p221 = por %p219, %p220
    %p223 = scmp.ne.s32.totalorder %s206, %s222
    %p224 = scmp.eq.s32.totalorder %s20, 0
    %p225 = por %p223, %p224
    %p226 = scmp.le.s32.totalorder 1, %s14
    %p227 = scmp.lt.s32.totalorder %s14, 3
    %p228 = pnand %p226, %p227
    %p229 = pneg %p228
    // Predicated region
    $region9: #{siamese_bert_forward.1} parent=5 // pred_check
      _
    $region10: #{siamese_bert_forward.1} parent=5 // pred_check_branch
      %231 = sbr.rel (%p228) target = $region12
    $region11: #{siamese_bert_forward.1} parent=5 // pred_region
      %s232 = ssub.s32 %s14, 1
      // Predicated region
      $region13: #{siamese_bert_forward.1} parent=11 // pred_check
        %p233 = pneg %p87
      $region14: #{siamese_bert_forward.1} parent=11 // pred_check_branch
        %235 = sbr.rel (%p233) target = $region16
      $region15: #{siamese_bert_forward.1} parent=11 // pred_region
        _
      $region16: #{siamese_bert_forward.1} parent=11 // pred_fallthru
        _
      // Predicated region
      $region17: #{siamese_bert_forward.1} parent=11 // pred_check
        %p236 = pneg %p108
      $region18: #{siamese_bert_forward.1} parent=11 // pred_check_branch
        %238 = sbr.rel (%p236) target = $region20
      $region19: #{siamese_bert_forward.1} parent=11 // pred_region
        _
      $region20: #{siamese_bert_forward.1} parent=11 // pred_fallthru
        _
      // Predicated region
      $region21: #{siamese_bert_forward.1} parent=11 // pred_check
        %p239 = pneg %p129
      $region22: #{siamese_bert_forward.1} parent=11 // pred_check_branch
        %241 = sbr.rel (%p239) target = $region24
      $region23: #{siamese_bert_forward.1} parent=11 // pred_region
        _
      $region24: #{siamese_bert_forward.1} parent=11 // pred_fallthru
        _
      // Predicated region
      $region25: #{siamese_bert_forward.1} parent=11 // pred_check
        %p242 = pneg %p150
      $region26: #{siamese_bert_forward.1} parent=11 // pred_check_branch
        %244 = sbr.rel (%p242) target = $region28
      $region27: #{siamese_bert_forward.1} parent=11 // pred_region
        _
      $region28: #{siamese_bert_forward.1} parent=11 // pred_fallthru
        _
      // Predicated region
      $region29: #{siamese_bert_forward.1} parent=11 // pred_check
        %p245 = pneg %p171
      $region30: #{siamese_bert_forward.1} parent=11 // pred_check_branch
        %247 = sbr.rel (%p245) target = $region32
      $region31: #{siamese_bert_forward.1} parent=11 // pred_region
        _
      $region32: #{siamese_bert_forward.1} parent=11 // pred_fallthru
        _
      // Predicated region
      $region33: #{siamese_bert_forward.1} parent=11 // pred_check
        %p248 = pneg %p192
      $region34: #{siamese_bert_forward.1} parent=11 // pred_check_branch
        %250 = sbr.rel (%p248) target = $region36
      $region35: #{siamese_bert_forward.1} parent=11 // pred_region
        _
      $region36: #{siamese_bert_forward.1} parent=11 // pred_fallthru
        _
    $region12: #{siamese_bert_forward.1} parent=5 // pred_fallthru
      _
    %p251 = scmp.lt.s32.totalorder %s14, 2
    // Predicated region
    $region37: #{siamese_bert_forward.1} parent=5 // pred_check
      %p252 = pneg %p251
    $region38: #{siamese_bert_forward.1} parent=5 // pred_check_branch
      %254 = sbr.rel (%p252) target = $region40
    $region39: #{siamese_bert_forward.1} parent=5 // pred_region
      // Predicated region
      $region41: #{siamese_bert_forward.1} parent=39 // pred_check
        %p255 = pneg %p34
      $region42: #{siamese_bert_forward.1} parent=39 // pred_check_branch
        %257 = sbr.rel (%p255) target = $region44
      $region43: #{siamese_bert_forward.1} parent=39 // pred_region
        %p258 = scmp.lt.s32.totalorder %s14, 1
        %s259 = scalar_select %p258, %s14, 1
        %s260 = smul.addr %s259, 8
        %s261 = scalar_lea.vmem %s0, %s260
      $region44: #{siamese_bert_forward.1} parent=39 // pred_fallthru
        _
      // Predicated region
      $region45: #{siamese_bert_forward.1} parent=39 // pred_check
        %p262 = pneg %p60
      $region46: #{siamese_bert_forward.1} parent=39 // pred_check_branch
        %264 = sbr.rel (%p262) target = $region48
      $region47: #{siamese_bert_forward.1} parent=39 // pred_region
        %p265 = scmp.lt.s32.totalorder %s14, 1
        %s266 = scalar_select %p265, %s14, 1
        %s267 = scalar_lea.vmem %s1, %s266
      $region48: #{siamese_bert_forward.1} parent=39 // pred_fallthru
        _
    $region40: #{siamese_bert_forward.1} parent=5 // pred_fallthru
      _
    %p268 = scmp.le.s32.totalorder 1, %s14
    %p269 = scmp.lt.s32.totalorder %s14, 3
    %p270 = pnand %p268, %p269
    %p271 = pneg %p270
    // Predicated region
    $region49: #{siamese_bert_forward.1} parent=5 // pred_check
      _
    $region50: #{siamese_bert_forward.1} parent=5 // pred_check_branch
      %273 = sbr.rel (%p270) target = $region52
    $region51: #{siamese_bert_forward.1} parent=5 // pred_region
      %s274 = ssub.s32 %s14, 1
      %p275 = scmp.lt.s32.totalorder %s19, 1
      %s276 = scalar_select %p275, %s19, 1
      %s277 = smul.addr %s276, 8
      %s278 = scalar_lea.vmem %s0, %s277
      %p279 = pneg %p40
      %p280 = pneg %p37
      %p281 = scmp.lt.s32.totalorder %s19, 1
      %s282 = scalar_select %p281, %s19, 1
      %s283 = scalar_lea.vmem %s1, %s282
      %p284 = pneg %p66
      %p285 = pneg %p63
      %p286 = pneg %p87
      %p287 = pneg %p84
      %p288 = pneg %p108
      %p289 = pneg %p105
      %p290 = pneg %p129
      %p291 = pneg %p126
      %p292 = pneg %p150
      %p293 = pneg %p147
      %p294 = pneg %p171
      %p295 = pneg %p168
      %p296 = pneg %p192
      %p297 = pneg %p189
      %p298 = pneg %p218
      %p299 = pneg %p215
      %p300 = scmp.lt.s32.totalorder %s19, 1
      %s301 = scalar_select %p300, %s19, 1
      %s302 = smul.addr %s301, 2
      %s303 = scalar_lea.vmem %s8, %s302
      %p304 = scmp.lt.s32.totalorder %s19, 1
      %s305 = scalar_select %p304, %s19, 1
      %s306 = smul.addr %s305, 8
      %s307 = scalar_lea.vmem %s0, %s306
      %p308 = scmp.lt.s32.totalorder %s19, 1
      %s309 = scalar_select %p308, %s19, 1
      %s310 = scalar_lea.vmem %s1, %s309
      %p311 = scmp.lt.s32.totalorder %s19, 1
      %s312 = scalar_select %p311, %s19, 1
      %s313 = smul.addr %s312, 2
      %s314 = scalar_lea.vmem %s8, %s313
      %v316 = vld [vmem:[%s307] sm:$0xff]
      %v317 = vld [vmem:[%s2] sm:$0x1]
      %v318 = vld [vmem:[%s2 + $0x1] sm:$0x1]
      %vm319 = vcmask 261120
      %v320 = vsel %vm319, %v316, 0.0
      %321 = vadd.xlane.f32.xlu0 %v320
      %v322 = vpop.xlane.xlu0 %321
      %v323 = vrcp.pop 32.0
      %v324 = vmul.f32 %v322, %v323
      %v325 = vsub.f32 %v316, %v324
      %v326 = vmul.f32 %v325, %v325
      %v327 = vsel %vm319, %v326, 0.0
      %328 = vadd.xlane.f32.xlu0 %v327
      %v329 = vpop.xlane.xlu0 %328
      %v330 = vmul.f32 %v329, %v323
      %v331 = vadd.f32 %v330, 1e-12
      %v332 = vrsqrt.pop %v331
      %v333 = vmul.f32 %v325, %v332
      %v334 = vlaneseq
      %v335 = vshrl.u32 %v334, 7
      %v336 = vsub.s32 0, %v335
      %v337 = vrot.slane %v317, %v336
      %v338 = vmul.f32 %v333, %v337
      %v339 = vlaneseq
      %v340 = vshrl.u32 %v339, 7
      %v341 = vsub.s32 0, %v340
      %v342 = vrot.slane %v318, %v341
      %v343 = vadd.f32 %v338, %v342
      %v344 = vld [vmem:[%s310] sm:$0x1]
      %v345 = vld [vmem:[%s3] sm:$0xf]
      %v346 = vld [vmem:[%s3 + $0x4] sm:$0xf]
      %v347 = vld [vmem:[%s3 + $0x8] sm:$0xf]
      %v348 = vld [vmem:[%s3 + $0xc] sm:$0xf]
      %v349 = vld [vmem:[%s4] sm:$0xf]
      %v350 = vld [vmem:[%s4 + $0x4] sm:$0xf]
      %v351 = vld [vmem:[%s4 + $0x8] sm:$0xf]
      %v352 = vld [vmem:[%s4 + $0xc] sm:$0xf]
      %v353 = vld [vmem:[%s5] sm:$0xf]
      %v354 = vld [vmem:[%s5 + $0x4] sm:$0xf]
      %v355 = vld [vmem:[%s5 + $0x8] sm:$0xf]
      %v356 = vld [vmem:[%s5 + $0xc] sm:$0xf]
      %v357 = vld [vmem:[%s6] sm:$0xf]
      %v358 = vld [vmem:[%s6 + $0x4] sm:$0xf]
      %v359 = vld [vmem:[%s6 + $0x8] sm:$0xf]
      %v360 = vld [vmem:[%s6 + $0xc] sm:$0xf]
      %v361 = vld [vmem:[%s6 + $0x10] sm:$0xf]
      %v362 = vld [vmem:[%s6 + $0x14] sm:$0xf]
      %v363 = vld [vmem:[%s6 + $0x18] sm:$0xf]
      %v364 = vld [vmem:[%s6 + $0x1c] sm:$0xf]
      %v365 = vld [vmem:[%s7] sm:$0xff]
      %v366 = vpack.c.bf16 %v343, %v343
      %v367 = vlaneseq
      %v368 = vshrl.u32 %v367, 7
      %v369 = vsub.s32 0, %v368
      %v370 = vrot.slane %v365, %v369
      %v375 = vunpack.c.l.b16 %v345
      %v376 = vunpack.c.l.b16 %v346
      %v377 = vunpack.c.l.b16 %v347
      %v378 = vunpack.c.l.b16 %v348
      %v379 = vpack.c.b16 %v376, %v375
      %v380 = vpack.c.b16 %v378, %v377
      %v384 = vsel %vm319, %v366, 0
      %386 = vmatprep.subr.bf16.mxu0 0
      %387 = vmatpush1.bf16.msra.mxu0 0
      %388 = vmatprep.subr.bf16.mxu0 0
      %389 = vmatpush1.bf16.msra.mxu0 0
      %390 = vmatprep.subr.bf16.mxu0 0
      %391 = vmatpush1.bf16.msra.mxu0 0
      %392 = vmatprep.subr.bf16.mxu0 0
      %393 = vmatpush1.bf16.msra.mxu0 0
      %394 = vmatprep.subr.bf16.mxu0 0
      %395 = vmatpush1.bf16.msra.mxu0 0
      %396 = vmatprep.subr.bf16.mxu0 0
      %397 = vmatpush1.bf16.msra.mxu0 0
      %398 = vmatprep.subr.bf16.mxu0 0
      %399 = vmatpush1.bf16.msra.mxu0 %v380
      %400 = vmatprep.subr.bf16.mxu0 0
      %401 = vmatpush1.bf16.msra.mxu0 %v379
      %402 = vmatprep.subr.bf16.mxu0 0
      %403 = vmatpush2.bf16.msra.mxu0 0
      %404 = vmatprep.subr.bf16.mxu0 0
      %405 = vmatpush2.bf16.msra.mxu0 0
      %406 = vmatprep.subr.bf16.mxu0 0
      %407 = vmatpush2.bf16.msra.mxu0 0
      %408 = vmatprep.subr.bf16.mxu0 0
      %409 = vmatpush2.bf16.msra.mxu0 0
      %410 = vmatprep.subr.bf16.mxu0 0
      %411 = vmatpush2.bf16.msra.mxu0 0
      %412 = vmatprep.subr.bf16.mxu0 0
      %413 = vmatpush2.bf16.msra.mxu0 0
      %414 = vmatprep.subr.bf16.mxu0 0
      %415 = vmatpush2.bf16.msra.mxu0 0
      %416 = vmatprep.subr.bf16.mxu0 0
      %417 = vmatpush2.bf16.msra.mxu0 0
      %418 = vmatprep.mubr.bf16.mxu0 0
      %419 = vmatmul.mubr.bf16.gmra.mxu0 %v384
      %v420 = vpop.f32.mrf.mxu0
      %v421 = vadd.f32 %v370, %v420
      %v422 = vpop.f32.mrf.mxu0
      %v423 = vpop.f32.mrf.mxu0
      %v424 = vpop.f32.mrf.mxu0
      %425 = vdwg.mxu0
      %427 = vrot.lane.b32.xlu0 %v421, 120
      %v428 = vpop.permute.xlu0 %427
      %429 = vrot.lane.b32.xlu0 %v421, 112
      %v430 = vpop.permute.xlu0 %429
      %431 = vrot.lane.b32.xlu0 %v421, 104
      %v432 = vpop.permute.xlu0 %431
      %433 = vrot.lane.b32.xlu0 %v421, 96
      %v434 = vpop.permute.xlu0 %433
      %vm435 = vcmask 64512
      %v436 = vsel %vm435, %v421, 0
      %v438 = vsel %vm435, %v434, 0
      %440 = vmatprep.subr.mxu0 0.0
      %441 = vmatpush1.xpose.msra.mxu0 0.0
      %442 = vmatprep.subr.mxu0 0.0
      %443 = vmatpush1.xpose.msra.mxu0 0.0
      %444 = vmatprep.subr.mxu0 0.0
      %445 = vmatpush1.xpose.msra.mxu0 0.0
      %446 = vmatprep.subr.mxu0 0.0
      %447 = vmatpush1.xpose.msra.mxu0 0.0
      %448 = vmatprep.subr.mxu0 0.0
      %449 = vmatpush1.xpose.msra.mxu0 0.0
      %450 = vmatprep.subr.mxu0 0.0
      %451 = vmatpush1.xpose.msra.mxu0 0.0
      %452 = vmatprep.subr.mxu0 0.0
      %453 = vmatpush1.xpose.msra.mxu0 0.0
      %454 = vmatprep.subr.mxu0 0.0
      %455 = vmatpush1.xpose.msra.mxu0 0.0
      %456 = vmatprep.subr.mxu0 0.0
      %457 = vmatpush1.xpose.msra.mxu0 0.0
      %458 = vmatprep.subr.mxu0 0.0
      %459 = vmatpush1.xpose.msra.mxu0 0.0
      %460 = vmatprep.subr.mxu0 0.0
      %461 = vmatpush1.xpose.msra.mxu0 0.0
      %462 = vmatprep.subr.mxu0 0.0
      %463 = vmatpush1.xpose.msra.mxu0 0.0
      %464 = vmatprep.subr.mxu0 0.0
      %465 = vmatpush1.xpose.msra.mxu0 0.0
      %466 = vmatprep.subr.mxu0 0.0
      %467 = vmatpush1.xpose.msra.mxu0 0.0
      %468 = vmatprep.subr.mxu0 0.0
      %469 = vmatpush1.xpose.msra.mxu0 0.0
      %470 = vmatprep.subr.mxu0 0.0
      %471 = vmatpush1.xpose.msra.mxu0 %v438
      %472 = vmatprep.subr.mxu0 0.0
      %473 = vmatpush2.xpose.msra.mxu0 0.0
      %474 = vmatprep.subr.mxu0 0.0
      %475 = vmatpush2.xpose.msra.mxu0 0.0
      %476 = vmatprep.subr.mxu0 0.0
      %477 = vmatpush2.xpose.msra.mxu0 0.0
      %478 = vmatprep.subr.mxu0 0.0
      %479 = vmatpush2.xpose.msra.mxu0 0.0
      %480 = vmatprep.subr.mxu0 0.0
      %481 = vmatpush2.xpose.msra.mxu0 0.0
      %482 = vmatprep.subr.mxu0 0.0
      %483 = vmatpush2.xpose.msra.mxu0 0.0
      %484 = vmatprep.subr.mxu0 0.0
      %485 = vmatpush2.xpose.msra.mxu0 0.0
      %486 = vmatprep.subr.mxu0 0.0
      %487 = vmatpush2.xpose.msra.mxu0 0.0
      %488 = vmatprep.subr.mxu0 0.0
      %489 = vmatpush2.xpose.msra.mxu0 0.0
      %490 = vmatprep.subr.mxu0 0.0
      %491 = vmatpush2.xpose.msra.mxu0 0.0
      %492 = vmatprep.subr.mxu0 0.0
      %493 = vmatpush2.xpose.msra.mxu0 0.0
      %494 = vmatprep.subr.mxu0 0.0
      %495 = vmatpush2.xpose.msra.mxu0 0.0
      %496 = vmatprep.subr.mxu0 0.0
      %497 = vmatpush2.xpose.msra.mxu0 0.0
      %498 = vmatprep.subr.mxu0 0.0
      %499 = vmatpush2.xpose.msra.mxu0 0.0
      %500 = vmatprep.subr.mxu0 0.0
      %501 = vmatpush2.xpose.msra.mxu0 0.0
      %502 = vmatprep.subr.mxu0 0.0
      %503 = vmatpush2.xpose.msra.mxu0 0.0
      %504 = vmatprep.mubr.f32.mxu0 0.0
      %505 = vmatmul.mubr.f32.gmra.mxu0 %v436
      %v506 = vpop.f32.mrf.mxu0
      %v507 = vadd.f32 0.0, %v506
      %v508 = vpop.f32.mrf.mxu0
      %509 = vdwg.mxu0
      %510 = vrot.lane.b32.xlu0 %v428, 96
      %v511 = vpop.permute.xlu0 %510
      %v512 = vsel %vm435, %v428, 0
      %v514 = vsel %vm435, %v511, 0
      %516 = vmatprep.subr.mxu0 0.0
      %517 = vmatpush1.xpose.msra.mxu0 0.0
      %518 = vmatprep.subr.mxu0 0.0
      %519 = vmatpush1.xpose.msra.mxu0 0.0
      %520 = vmatprep.subr.mxu0 0.0
      %521 = vmatpush1.xpose.msra.mxu0 0.0
      %522 = vmatprep.subr.mxu0 0.0
      %523 = vmatpush1.xpose.msra.mxu0 0.0
      %524 = vmatprep.subr.mxu0 0.0
      %525 = vmatpush1.xpose.msra.mxu0 0.0
      %526 = vmatprep.subr.mxu0 0.0
      %527 = vmatpush1.xpose.msra.mxu0 0.0
      %528 = vmatprep.subr.mxu0 0.0
      %529 = vmatpush1.xpose.msra.mxu0 0.0
      %530 = vmatprep.subr.mxu0 0.0
      %531 = vmatpush1.xpose.msra.mxu0 0.0
      %532 = vmatprep.subr.mxu0 0.0
      %533 = vmatpush1.xpose.msra.mxu0 0.0
      %534 = vmatprep.subr.mxu0 0.0
      %535 = vmatpush1.xpose.msra.mxu0 0.0
      %536 = vmatprep.subr.mxu0 0.0
      %537 = vmatpush1.xpose.msra.mxu0 0.0
      %538 = vmatprep.subr.mxu0 0.0
      %539 = vmatpush1.xpose.msra.mxu0 0.0
      %540 = vmatprep.subr.mxu0 0.0
      %541 = vmatpush1.xpose.msra.mxu0 0.0
      %542 = vmatprep.subr.mxu0 0.0
      %543 = vmatpush1.xpose.msra.mxu0 0.0
      %544 = vmatprep.subr.mxu0 0.0
      %545 = vmatpush1.xpose.msra.mxu0 0.0
      %546 = vmatprep.subr.mxu0 0.0
      %547 = vmatpush1.xpose.msra.mxu0 %v514
      %548 = vmatprep.subr.mxu0 0.0
      %549 = vmatpush2.xpose.msra.mxu0 0.0
      %550 = vmatprep.subr.mxu0 0.0
      %551 = vmatpush2.xpose.msra.mxu0 0.0
      %552 = vmatprep.subr.mxu0 0.0
      %553 = vmatpush2.xpose.msra.mxu0 0.0
      %554 = vmatprep.subr.mxu0 0.0
      %555 = vmatpush2.xpose.msra.mxu0 0.0
      %556 = vmatprep.subr.mxu0 0.0
      %557 = vmatpush2.xpose.msra.mxu0 0.0
      %558 = vmatprep.subr.mxu0 0.0
      %559 = vmatpush2.xpose.msra.mxu0 0.0
      %560 = vmatprep.subr.mxu0 0.0
      %561 = vmatpush2.xpose.msra.mxu0 0.0
      %562 = vmatprep.subr.mxu0 0.0
      %563 = vmatpush2.xpose.msra.mxu0 0.0
      %564 = vmatprep.subr.mxu0 0.0
      %565 = vmatpush2.xpose.msra.mxu0 0.0
      %566 = vmatprep.subr.mxu0 0.0
      %567 = vmatpush2.xpose.msra.mxu0 0.0
      %568 = vmatprep.subr.mxu0 0.0
      %569 = vmatpush2.xpose.msra.mxu0 0.0
      %570 = vmatprep.subr.mxu0 0.0
      %571 = vmatpush2.xpose.msra.mxu0 0.0
      %572 = vmatprep.subr.mxu0 0.0
      %573 = vmatpush2.xpose.msra.mxu0 0.0
      %574 = vmatprep.subr.mxu0 0.0
      %575 = vmatpush2.xpose.msra.mxu0 0.0
      %576 = vmatprep.subr.mxu0 0.0
      %577 = vmatpush2.xpose.msra.mxu0 0.0
      %578 = vmatprep.subr.mxu0 0.0
      %579 = vmatpush2.xpose.msra.mxu0 0.0
      %580 = vmatprep.mubr.f32.mxu0 0.0
      %581 = vmatmul.mubr.f32.gmra.mxu0 %v512
      %v582 = vpop.f32.mrf.mxu0
      %v583 = vadd.f32 0.0, %v582
      %v584 = vpop.f32.mrf.mxu0
      %585 = vdwg.mxu0
      %586 = vrot.lane.b32.xlu0 %v430, 96
      %v587 = vpop.permute.xlu0 %586
      %v588 = vsel %vm435, %v430, 0
      %v590 = vsel %vm435, %v587, 0
      %592 = vmatprep.subr.mxu0 0.0
      %593 = vmatpush1.xpose.msra.mxu0 0.0
      %594 = vmatprep.subr.mxu0 0.0
      %595 = vmatpush1.xpose.msra.mxu0 0.0
      %596 = vmatprep.subr.mxu0 0.0
      %597 = vmatpush1.xpose.msra.mxu0 0.0
      %598 = vmatprep.subr.mxu0 0.0
      %599 = vmatpush1.xpose.msra.mxu0 0.0
      %600 = vmatprep.subr.mxu0 0.0
      %601 = vmatpush1.xpose.msra.mxu0 0.0
      %602 = vmatprep.subr.mxu0 0.0
      %603 = vmatpush1.xpose.msra.mxu0 0.0
      %604 = vmatprep.subr.mxu0 0.0
      %605 = vmatpush1.xpose.msra.mxu0 0.0
      %606 = vmatprep.subr.mxu0 0.0
      %607 = vmatpush1.xpose.msra.mxu0 0.0
      %608 = vmatprep.subr.mxu0 0.0
      %609 = vmatpush1.xpose.msra.mxu0 0.0
      %610 = vmatprep.subr.mxu0 0.0
      %611 = vmatpush1.xpose.msra.mxu0 0.0
      %612 = vmatprep.subr.mxu0 0.0
      %613 = vmatpush1.xpose.msra.mxu0 0.0
      %614 = vmatprep.subr.mxu0 0.0
      %615 = vmatpush1.xpose.msra.mxu0 0.0
      %616 = vmatprep.subr.mxu0 0.0
      %617 = vmatpush1.xpose.msra.mxu0 0.0
      %618 = vmatprep.subr.mxu0 0.0
      %619 = vmatpush1.xpose.msra.mxu0 0.0
      %620 = vmatprep.subr.mxu0 0.0
      %621 = vmatpush1.xpose.msra.mxu0 0.0
      %622 = vmatprep.subr.mxu0 0.0
      %623 = vmatpush1.xpose.msra.mxu0 %v590
      %624 = vmatprep.subr.mxu0 0.0
      %625 = vmatpush2.xpose.msra.mxu0 0.0
      %626 = vmatprep.subr.mxu0 0.0
      %627 = vmatpush2.xpose.msra.mxu0 0.0
      %628 = vmatprep.subr.mxu0 0.0
      %629 = vmatpush2.xpose.msra.mxu0 0.0
      %630 = vmatprep.subr.mxu0 0.0
      %631 = vmatpush2.xpose.msra.mxu0 0.0
      %632 = vmatprep.subr.mxu0 0.0
      %633 = vmatpush2.xpose.msra.mxu0 0.0
      %634 = vmatprep.subr.mxu0 0.0
      %635 = vmatpush2.xpose.msra.mxu0 0.0
      %636 = vmatprep.subr.mxu0 0.0
      %637 = vmatpush2.xpose.msra.mxu0 0.0
      %638 = vmatprep.subr.mxu0 0.0
      %639 = vmatpush2.xpose.msra.mxu0 0.0
      %640 = vmatprep.subr.mxu0 0.0
      %641 = vmatpush2.xpose.msra.mxu0 0.0
      %642 = vmatprep.subr.mxu0 0.0
      %643 = vmatpush2.xpose.msra.mxu0 0.0
      %644 = vmatprep.subr.mxu0 0.0
      %645 = vmatpush2.xpose.msra.mxu0 0.0
      %646 = vmatprep.subr.mxu0 0.0
      %647 = vmatpush2.xpose.msra.mxu0 0.0
      %648 = vmatprep.subr.mxu0 0.0
      %649 = vmatpush2.xpose.msra.mxu0 0.0
      %650 = vmatprep.subr.mxu0 0.0
      %651 = vmatpush2.xpose.msra.mxu0 0.0
      %652 = vmatprep.subr.mxu0 0.0
      %653 = vmatpush2.xpose.msra.mxu0 0.0
      %654 = vmatprep.subr.mxu0 0.0
      %655 = vmatpush2.xpose.msra.mxu0 0.0
      %656 = vmatprep.mubr.f32.mxu0 0.0
      %657 = vmatmul.mubr.f32.gmra.mxu0 %v588
      %v658 = vpop.f32.mrf.mxu0
      %v659 = vadd.f32 0.0, %v658
      %v660 = vpop.f32.mrf.mxu0
      %661 = vdwg.mxu0
      %662 = vrot.lane.b32.xlu0 %v432, 96
      %v663 = vpop.permute.xlu0 %662
      %v664 = vsel %vm435, %v432, 0
      %v666 = vsel %vm435, %v663, 0
      %668 = vmatprep.subr.mxu0 0.0
      %669 = vmatpush1.xpose.msra.mxu0 0.0
      %670 = vmatprep.subr.mxu0 0.0
      %671 = vmatpush1.xpose.msra.mxu0 0.0
      %672 = vmatprep.subr.mxu0 0.0
      %673 = vmatpush1.xpose.msra.mxu0 0.0
      %674 = vmatprep.subr.mxu0 0.0
      %675 = vmatpush1.xpose.msra.mxu0 0.0
      %676 = vmatprep.subr.mxu0 0.0
      %677 = vmatpush1.xpose.msra.mxu0 0.0
      %678 = vmatprep.subr.mxu0 0.0
      %679 = vmatpush1.xpose.msra.mxu0 0.0
      %680 = vmatprep.subr.mxu0 0.0
      %681 = vmatpush1.xpose.msra.mxu0 0.0
      %682 = vmatprep.subr.mxu0 0.0
      %683 = vmatpush1.xpose.msra.mxu0 0.0
      %684 = vmatprep.subr.mxu0 0.0
      %685 = vmatpush1.xpose.msra.mxu0 0.0
      %686 = vmatprep.subr.mxu0 0.0
      %687 = vmatpush1.xpose.msra.mxu0 0.0
      %688 = vmatprep.subr.mxu0 0.0
      %689 = vmatpush1.xpose.msra.mxu0 0.0
      %690 = vmatprep.subr.mxu0 0.0
      %691 = vmatpush1.xpose.msra.mxu0 0.0
      %692 = vmatprep.subr.mxu0 0.0
      %693 = vmatpush1.xpose.msra.mxu0 0.0
      %694 = vmatprep.subr.mxu0 0.0
      %695 = vmatpush1.xpose.msra.mxu0 0.0
      %696 = vmatprep.subr.mxu0 0.0
      %697 = vmatpush1.xpose.msra.mxu0 0.0
      %698 = vmatprep.subr.mxu0 0.0
      %699 = vmatpush1.xpose.msra.mxu0 %v666
      %700 = vmatprep.subr.mxu0 0.0
      %701 = vmatpush2.xpose.msra.mxu0 0.0
      %702 = vmatprep.subr.mxu0 0.0
      %703 = vmatpush2.xpose.msra.mxu0 0.0
      %704 = vmatprep.subr.mxu0 0.0
      %705 = vmatpush2.xpose.msra.mxu0 0.0
      %706 = vmatprep.subr.mxu0 0.0
      %707 = vmatpush2.xpose.msra.mxu0 0.0
      %708 = vmatprep.subr.mxu0 0.0
      %709 = vmatpush2.xpose.msra.mxu0 0.0
      %710 = vmatprep.subr.mxu0 0.0
      %711 = vmatpush2.xpose.msra.mxu0 0.0
      %712 = vmatprep.subr.mxu0 0.0
      %713 = vmatpush2.xpose.msra.mxu0 0.0
      %714 = vmatprep.subr.mxu0 0.0
      %715 = vmatpush2.xpose.msra.mxu0 0.0
      %716 = vmatprep.subr.mxu0 0.0
      %717 = vmatpush2.xpose.msra.mxu0 0.0
      %718 = vmatprep.subr.mxu0 0.0
      %719 = vmatpush2.xpose.msra.mxu0 0.0
      %720 = vmatprep.subr.mxu0 0.0
      %721 = vmatpush2.xpose.msra.mxu0 0.0
      %722 = vmatprep.subr.mxu0 0.0
      %723 = vmatpush2.xpose.msra.mxu0 0.0
      %724 = vmatprep.subr.mxu0 0.0
      %725 = vmatpush2.xpose.msra.mxu0 0.0
      %726 = vmatprep.subr.mxu0 0.0
      %727 = vmatpush2.xpose.msra.mxu0 0.0
      %728 = vmatprep.subr.mxu0 0.0
      %729 = vmatpush2.xpose.msra.mxu0 0.0
      %730 = vmatprep.subr.mxu0 0.0
      %731 = vmatpush2.xpose.msra.mxu0 0.0
      %732 = vmatprep.mubr.f32.mxu0 0.0
      %733 = vmatmul.mubr.f32.gmra.mxu0 %v664
      %v734 = vpop.f32.mrf.mxu0
      %v735 = vadd.f32 0.0, %v734
      %v736 = vpop.f32.mrf.mxu0
      %737 = vdwg.mxu0
      %v738 = vmul.f32 %v507, 0.35355338
      %v739 = vmul.f32 %v583, 0.35355338
      %v740 = vmul.f32 %v659, 0.35355338
      %v741 = vmul.f32 %v735, 0.35355338
      %v743 = vlaneseq
      %v744 = vshrl.u32 %v743, 7
      %v745 = vsub.s32 0, %v744
      %v746 = vrot.slane %v344, %v745
      %v748 = vadd.f32 %v738, %v746
      %v749 = vadd.f32 %v739, %v746
      %v750 = vadd.f32 %v740, %v746
      %v751 = vadd.f32 %v741, %v746
      %v752 = vsel %vm435, %v748, -inf
      %753 = vmax.xlane.f32.xlu0 %v752
      %v754 = vpop.xlane.xlu0 %753
      %v755 = vsel %vm435, %v749, -inf
      %756 = vmax.xlane.f32.xlu0 %v755
      %v757 = vpop.xlane.xlu0 %756
      %v758 = vsel %vm435, %v750, -inf
      %759 = vmax.xlane.f32.xlu0 %v758
      %v760 = vpop.xlane.xlu0 %759
      %v761 = vsel %vm435, %v751, -inf
      %762 = vmax.xlane.f32.xlu0 %v761
      %v763 = vpop.xlane.xlu0 %762
      %v764 = vsub.f32 %v748, %v754
      %v765 = vsub.f32 %v749, %v757
      %v766 = vsub.f32 %v750, %v760
      %v767 = vsub.f32 %v751, %v763
      %v768 = vmul.f32 %v764, 1.442695
      %v769 = vpow.pop %v768
      %v770 = vmul.f32 %v765, 1.442695
      %v771 = vpow.pop %v770
      %v772 = vmul.f32 %v766, 1.442695
      %v773 = vpow.pop %v772
      %v774 = vmul.f32 %v767, 1.442695
      %v775 = vpow.pop %v774
      %v776 = vsel %vm435, %v769, 0.0
      %777 = vadd.xlane.f32.xlu0 %v776
      %v778 = vpop.xlane.xlu0 %777
      %v779 = vsel %vm435, %v771, 0.0
      %780 = vadd.xlane.f32.xlu0 %v779
      %v781 = vpop.xlane.xlu0 %780
      %v782 = vsel %vm435, %v773, 0.0
      %783 = vadd.xlane.f32.xlu0 %v782
      %v784 = vpop.xlane.xlu0 %783
      %v785 = vsel %vm435, %v775, 0.0
      %786 = vadd.xlane.f32.xlu0 %v785
      %v787 = vpop.xlane.xlu0 %786
      %v788 = vrcp.pop %v778
      %v789 = vrcp.pop %v781
      %v790 = vrcp.pop %v784
      %v791 = vrcp.pop %v787
      %v792 = vmul.f32 %v769, %v788
      %v793 = vmul.f32 %v771, %v789
      %v794 = vmul.f32 %v773, %v790
      %v795 = vmul.f32 %v775, %v791
      %796 = vrot.lane.b32.xlu0 %v421, 64
      %v797 = vpop.permute.xlu0 %796
      %v800 = vsel %vm435, %v792, 0
      %802 = vmatprep.subr.mxu0 0.0
      %803 = vmatpush1.msra.mxu0 0.0
      %804 = vmatprep.subr.mxu0 0.0
      %805 = vmatpush1.msra.mxu0 0.0
      %806 = vmatprep.subr.mxu0 0.0
      %807 = vmatpush1.msra.mxu0 0.0
      %808 = vmatprep.subr.mxu0 0.0
      %809 = vmatpush1.msra.mxu0 0.0
      %810 = vmatprep.subr.mxu0 0.0
      %811 = vmatpush1.msra.mxu0 0.0
      %812 = vmatprep.subr.mxu0 0.0
      %813 = vmatpush1.msra.mxu0 0.0
      %814 = vmatprep.subr.mxu0 0.0
      %815 = vmatpush1.msra.mxu0 0.0
      %816 = vmatprep.subr.mxu0 0.0
      %817 = vmatpush1.msra.mxu0 0.0
      %818 = vmatprep.subr.mxu0 0.0
      %819 = vmatpush1.msra.mxu0 0.0
      %820 = vmatprep.subr.mxu0 0.0
      %821 = vmatpush1.msra.mxu0 0.0
      %822 = vmatprep.subr.mxu0 0.0
      %823 = vmatpush1.msra.mxu0 0.0
      %824 = vmatprep.subr.mxu0 0.0
      %825 = vmatpush1.msra.mxu0 0.0
      %826 = vmatprep.subr.mxu0 0.0
      %827 = vmatpush1.msra.mxu0 0.0
      %828 = vmatprep.subr.mxu0 0.0
      %829 = vmatpush1.msra.mxu0 0.0
      %830 = vmatprep.subr.mxu0 0.0
      %831 = vmatpush1.msra.mxu0 0.0
      %832 = vmatprep.subr.mxu0 0.0
      %833 = vmatpush1.msra.mxu0 %v797
      %834 = vmatprep.subr.mxu0 0.0
      %835 = vmatpush2.msra.mxu0 0.0
      %836 = vmatprep.subr.mxu0 0.0
      %837 = vmatpush2.msra.mxu0 0.0
      %838 = vmatprep.subr.mxu0 0.0
      %839 = vmatpush2.msra.mxu0 0.0
      %840 = vmatprep.subr.mxu0 0.0
      %841 = vmatpush2.msra.mxu0 0.0
      %842 = vmatprep.subr.mxu0 0.0
      %843 = vmatpush2.msra.mxu0 0.0
      %844 = vmatprep.subr.mxu0 0.0
      %845 = vmatpush2.msra.mxu0 0.0
      %846 = vmatprep.subr.mxu0 0.0
      %847 = vmatpush2.msra.mxu0 0.0
      %848 = vmatprep.subr.mxu0 0.0
      %849 = vmatpush2.msra.mxu0 0.0
      %850 = vmatprep.subr.mxu0 0.0
      %851 = vmatpush2.msra.mxu0 0.0
      %852 = vmatprep.subr.mxu0 0.0
      %853 = vmatpush2.msra.mxu0 0.0
      %854 = vmatprep.subr.mxu0 0.0
      %855 = vmatpush2.msra.mxu0 0.0
      %856 = vmatprep.subr.mxu0 0.0
      %857 = vmatpush2.msra.mxu0 0.0
      %858 = vmatprep.subr.mxu0 0.0
      %859 = vmatpush2.msra.mxu0 0.0
      %860 = vmatprep.subr.mxu0 0.0
      %861 = vmatpush2.msra.mxu0 0.0
      %862 = vmatprep.subr.mxu0 0.0
      %863 = vmatpush2.msra.mxu0 0.0
      %864 = vmatprep.subr.mxu0 0.0
      %865 = vmatpush2.msra.mxu0 0.0
      %866 = vmatprep.mubr.f32.mxu0 0.0
      %867 = vmatmul.mubr.f32.gmra.mxu0 %v800
      %v868 = vpop.f32.mrf.mxu0
      %v869 = vadd.f32 0.0, %v868
      %v870 = vpop.f32.mrf.mxu0
      %871 = vdwg.mxu0
      %872 = vrot.lane.b32.xlu0 %v428, 64
      %v873 = vpop.permute.xlu0 %872
      %v876 = vsel %vm435, %v793, 0
      %878 = vmatprep.subr.mxu0 0.0
      %879 = vmatpush1.msra.mxu0 0.0
      %880 = vmatprep.subr.mxu0 0.0
      %881 = vmatpush1.msra.mxu0 0.0
      %882 = vmatprep.subr.mxu0 0.0
      %883 = vmatpush1.msra.mxu0 0.0
      %884 = vmatprep.subr.mxu0 0.0
      %885 = vmatpush1.msra.mxu0 0.0
      %886 = vmatprep.subr.mxu0 0.0
      %887 = vmatpush1.msra.mxu0 0.0
      %888 = vmatprep.subr.mxu0 0.0
      %889 = vmatpush1.msra.mxu0 0.0
      %890 = vmatprep.subr.mxu0 0.0
      %891 = vmatpush1.msra.mxu0 0.0
      %892 = vmatprep.subr.mxu0 0.0
      %893 = vmatpush1.msra.mxu0 0.0
      %894 = vmatprep.subr.mxu0 0.0
      %895 = vmatpush1.msra.mxu0 0.0
      %896 = vmatprep.subr.mxu0 0.0
      %897 = vmatpush1.msra.mxu0 0.0
      %898 = vmatprep.subr.mxu0 0.0
      %899 = vmatpush1.msra.mxu0 0.0
      %900 = vmatprep.subr.mxu0 0.0
      %901 = vmatpush1.msra.mxu0 0.0
      %902 = vmatprep.subr.mxu0 0.0
      %903 = vmatpush1.msra.mxu0 0.0
      %904 = vmatprep.subr.mxu0 0.0
      %905 = vmatpush1.msra.mxu0 0.0
      %906 = vmatprep.subr.mxu0 0.0
      %907 = vmatpush1.msra.mxu0 0.0
      %908 = vmatprep.subr.mxu0 0.0
      %909 = vmatpush1.msra.mxu0 %v873
      %910 = vmatprep.subr.mxu0 0.0
      %911 = vmatpush2.msra.mxu0 0.0
      %912 = vmatprep.subr.mxu0 0.0
      %913 = vmatpush2.msra.mxu0 0.0
      %914 = vmatprep.subr.mxu0 0.0
      %915 = vmatpush2.msra.mxu0 0.0
      %916 = vmatprep.subr.mxu0 0.0
      %917 = vmatpush2.msra.mxu0 0.0
      %918 = vmatprep.subr.mxu0 0.0
      %919 = vmatpush2.msra.mxu0 0.0
      %920 = vmatprep.subr.mxu0 0.0
      %921 = vmatpush2.msra.mxu0 0.0
      %922 = vmatprep.subr.mxu0 0.0
      %923 = vmatpush2.msra.mxu0 0.0
      %924 = vmatprep.subr.mxu0 0.0
      %925 = vmatpush2.msra.mxu0 0.0
      %926 = vmatprep.subr.mxu0 0.0
      %927 = vmatpush2.msra.mxu0 0.0
      %928 = vmatprep.subr.mxu0 0.0
      %929 = vmatpush2.msra.mxu0 0.0
      %930 = vmatprep.subr.mxu0 0.0
      %931 = vmatpush2.msra.mxu0 0.0
      %932 = vmatprep.subr.mxu0 0.0
      %933 = vmatpush2.msra.mxu0 0.0
      %934 = vmatprep.subr.mxu0 0.0
      %935 = vmatpush2.msra.mxu0 0.0
      %936 = vmatprep.subr.mxu0 0.0
      %937 = vmatpush2.msra.mxu0 0.0
      %938 = vmatprep.subr.mxu0 0.0
      %939 = vmatpush2.msra.mxu0 0.0
      %940 = vmatprep.subr.mxu0 0.0
      %941 = vmatpush2.msra.mxu0 0.0
      %942 = vmatprep.mubr.f32.mxu0 0.0
      %943 = vmatmul.mubr.f32.gmra.mxu0 %v876
      %v944 = vpop.f32.mrf.mxu0
      %v945 = vadd.f32 0.0, %v944
      %v946 = vpop.f32.mrf.mxu0
      %947 = vdwg.mxu0
      %948 = vrot.lane.b32.xlu0 %v430, 64
      %v949 = vpop.permute.xlu0 %948
      %v952 = vsel %vm435, %v794, 0
      %954 = vmatprep.subr.mxu0 0.0
      %955 = vmatpush1.msra.mxu0 0.0
      %956 = vmatprep.subr.mxu0 0.0
      %957 = vmatpush1.msra.mxu0 0.0
      %958 = vmatprep.subr.mxu0 0.0
      %959 = vmatpush1.msra.mxu0 0.0
      %960 = vmatprep.subr.mxu0 0.0
      %961 = vmatpush1.msra.mxu0 0.0
      %962 = vmatprep.subr.mxu0 0.0
      %963 = vmatpush1.msra.mxu0 0.0
      %964 = vmatprep.subr.mxu0 0.0
      %965 = vmatpush1.msra.mxu0 0.0
      %966 = vmatprep.subr.mxu0 0.0
      %967 = vmatpush1.msra.mxu0 0.0
      %968 = vmatprep.subr.mxu0 0.0
      %969 = vmatpush1.msra.mxu0 0.0
      %970 = vmatprep.subr.mxu0 0.0
      %971 = vmatpush1.msra.mxu0 0.0
      %972 = vmatprep.subr.mxu0 0.0
      %973 = vmatpush1.msra.mxu0 0.0
      %974 = vmatprep.subr.mxu0 0.0
      %975 = vmatpush1.msra.mxu0 0.0
      %976 = vmatprep.subr.mxu0 0.0
      %977 = vmatpush1.msra.mxu0 0.0
      %978 = vmatprep.subr.mxu0 0.0
      %979 = vmatpush1.msra.mxu0 0.0
      %980 = vmatprep.subr.mxu0 0.0
      %981 = vmatpush1.msra.mxu0 0.0
      %982 = vmatprep.subr.mxu0 0.0
      %983 = vmatpush1.msra.mxu0 0.0
      %984 = vmatprep.subr.mxu0 0.0
      %985 = vmatpush1.msra.mxu0 %v949
      %986 = vmatprep.subr.mxu0 0.0
      %987 = vmatpush2.msra.mxu0 0.0
      %988 = vmatprep.subr.mxu0 0.0
      %989 = vmatpush2.msra.mxu0 0.0
      %990 = vmatprep.subr.mxu0 0.0
      %991 = vmatpush2.msra.mxu0 0.0
      %992 = vmatprep.subr.mxu0 0.0
      %993 = vmatpush2.msra.mxu0 0.0
      %994 = vmatprep.subr.mxu0 0.0
      %995 = vmatpush2.msra.mxu0 0.0
      %996 = vmatprep.subr.mxu0 0.0
      %997 = vmatpush2.msra.mxu0 0.0
      %998 = vmatprep.subr.mxu0 0.0
      %999 = vmatpush2.msra.mxu0 0.0
      %1000 = vmatprep.subr.mxu0 0.0
      %1001 = vmatpush2.msra.mxu0 0.0
      %1002 = vmatprep.subr.mxu0 0.0
      %1003 = vmatpush2.msra.mxu0 0.0
      %1004 = vmatprep.subr.mxu0 0.0
      %1005 = vmatpush2.msra.mxu0 0.0
      %1006 = vmatprep.subr.mxu0 0.0
      %1007 = vmatpush2.msra.mxu0 0.0
      %1008 = vmatprep.subr.mxu0 0.0
      %1009 = vmatpush2.msra.mxu0 0.0
      %1010 = vmatprep.subr.mxu0 0.0
      %1011 = vmatpush2.msra.mxu0 0.0
      %1012 = vmatprep.subr.mxu0 0.0
      %1013 = vmatpush2.msra.mxu0 0.0
      %1014 = vmatprep.subr.mxu0 0.0
      %1015 = vmatpush2.msra.mxu0 0.0
      %1016 = vmatprep.subr.mxu0 0.0
      %1017 = vmatpush2.msra.mxu0 0.0
      %1018 = vmatprep.mubr.f32.mxu0 0.0
      %1019 = vmatmul.mubr.f32.gmra.mxu0 %v952
      %v1020 = vpop.f32.mrf.mxu0
      %v1021 = vadd.f32 0.0, %v1020
      %v1022 = vpop.f32.mrf.mxu0
      %1023 = vdwg.mxu0
      %1024 = vrot.lane.b32.xlu0 %v432, 64
      %v1025 = vpop.permute.xlu0 %1024
      %v1028 = vsel %vm435, %v795, 0
      %1030 = vmatprep.subr.mxu0 0.0
      %1031 = vmatpush1.msra.mxu0 0.0
      %1032 = vmatprep.subr.mxu0 0.0
      %1033 = vmatpush1.msra.mxu0 0.0
      %1034 = vmatprep.subr.mxu0 0.0
      %1035 = vmatpush1.msra.mxu0 0.0
      %1036 = vmatprep.subr.mxu0 0.0
      %1037 = vmatpush1.msra.mxu0 0.0
      %1038 = vmatprep.subr.mxu0 0.0
      %1039 = vmatpush1.msra.mxu0 0.0
      %1040 = vmatprep.subr.mxu0 0.0
      %1041 = vmatpush1.msra.mxu0 0.0
      %1042 = vmatprep.subr.mxu0 0.0
      %1043 = vmatpush1.msra.mxu0 0.0
      %1044 = vmatprep.subr.mxu0 0.0
      %1045 = vmatpush1.msra.mxu0 0.0
      %1046 = vmatprep.subr.mxu0 0.0
      %1047 = vmatpush1.msra.mxu0 0.0
      %1048 = vmatprep.subr.mxu0 0.0
      %1049 = vmatpush1.msra.mxu0 0.0
      %1050 = vmatprep.subr.mxu0 0.0
      %1051 = vmatpush1.msra.mxu0 0.0
      %1052 = vmatprep.subr.mxu0 0.0
      %1053 = vmatpush1.msra.mxu0 0.0
      %1054 = vmatprep.subr.mxu0 0.0
      %1055 = vmatpush1.msra.mxu0 0.0
      %1056 = vmatprep.subr.mxu0 0.0
      %1057 = vmatpush1.msra.mxu0 0.0
      %1058 = vmatprep.subr.mxu0 0.0
      %1059 = vmatpush1.msra.mxu0 0.0
      %1060 = vmatprep.subr.mxu0 0.0
      %1061 = vmatpush1.msra.mxu0 %v1025
      %1062 = vmatprep.subr.mxu0 0.0
      %1063 = vmatpush2.msra.mxu0 0.0
      %1064 = vmatprep.subr.mxu0 0.0
      %1065 = vmatpush2.msra.mxu0 0.0
      %1066 = vmatprep.subr.mxu0 0.0
      %1067 = vmatpush2.msra.mxu0 0.0
      %1068 = vmatprep.subr.mxu0 0.0
      %1069 = vmatpush2.msra.mxu0 0.0
      %1070 = vmatprep.subr.mxu0 0.0
      %1071 = vmatpush2.msra.mxu0 0.0
      %1072 = vmatprep.subr.mxu0 0.0
      %1073 = vmatpush2.msra.mxu0 0.0
      %1074 = vmatprep.subr.mxu0 0.0
      %1075 = vmatpush2.msra.mxu0 0.0
      %1076 = vmatprep.subr.mxu0 0.0
      %1077 = vmatpush2.msra.mxu0 0.0
      %1078 = vmatprep.subr.mxu0 0.0
      %1079 = vmatpush2.msra.mxu0 0.0
      %1080 = vmatprep.subr.mxu0 0.0
      %1081 = vmatpush2.msra.mxu0 0.0
      %1082 = vmatprep.subr.mxu0 0.0
      %1083 = vmatpush2.msra.mxu0 0.0
      %1084 = vmatprep.subr.mxu0 0.0
      %1085 = vmatpush2.msra.mxu0 0.0
      %1086 = vmatprep.subr.mxu0 0.0
      %1087 = vmatpush2.msra.mxu0 0.0
      %1088 = vmatprep.subr.mxu0 0.0
      %1089 = vmatpush2.msra.mxu0 0.0
      %1090 = vmatprep.subr.mxu0 0.0
      %1091 = vmatpush2.msra.mxu0 0.0
      %1092 = vmatprep.subr.mxu0 0.0
      %1093 = vmatpush2.msra.mxu0 0.0
      %1094 = vmatprep.mubr.f32.mxu0 0.0
      %1095 = vmatmul.mubr.f32.gmra.mxu0 %v1028
      %v1096 = vpop.f32.mrf.mxu0
      %v1097 = vadd.f32 0.0, %v1096
      %v1098 = vpop.f32.mrf.mxu0
      %1099 = vdwg.mxu0
      %1101 = vrot.lane.b32.xlu0 %v945, 8
      %v1102 = vpop.permute.xlu0 %1101
      %1105 = vrot.lane.b32.xlu0 %v1021, 16
      %v1106 = vpop.permute.xlu0 %1105
      %1109 = vrot.lane.b32.xlu0 %v1097, 24
      %v1110 = vpop.permute.xlu0 %1109
      %v1112 = vsel %vm435, %v869, %v1102
      %vm1113 = vcmask 130048
      %v1114 = vsel %vm1113, %v1112, %v1106
      %vm1115 = vcmask 195584
      %v1116 = vsel %vm1115, %v1114, %v1110
      %v1117 = vpack.c.bf16 %v1116, %v1116
      %v1118 = vlaneseq
      %v1119 = vshrl.u32 %v1118, 7
      %v1120 = vsub.s32 1, %v1119
      %v1121 = vrot.slane %v365, %v1120
      %v1126 = vunpack.c.l.b16 %v349
      %v1127 = vunpack.c.l.b16 %v350
      %v1128 = vunpack.c.l.b16 %v351
      %v1129 = vunpack.c.l.b16 %v352
      %v1130 = vpack.c.b16 %v1127, %v1126
      %v1131 = vpack.c.b16 %v1129, %v1128
      %v1135 = vsel %vm319, %v1117, 0
      %1137 = vmatprep.subr.bf16.mxu0 0
      %1138 = vmatpush1.bf16.msra.mxu0 0
      %1139 = vmatprep.subr.bf16.mxu0 0
      %1140 = vmatpush1.bf16.msra.mxu0 0
      %1141 = vmatprep.subr.bf16.mxu0 0
      %1142 = vmatpush1.bf16.msra.mxu0 0
      %1143 = vmatprep.subr.bf16.mxu0 0
      %1144 = vmatpush1.bf16.msra.mxu0 0
      %1145 = vmatprep.subr.bf16.mxu0 0
      %1146 = vmatpush1.bf16.msra.mxu0 0
      %1147 = vmatprep.subr.bf16.mxu0 0
      %1148 = vmatpush1.bf16.msra.mxu0 0
      %1149 = vmatprep.subr.bf16.mxu0 0
      %1150 = vmatpush1.bf16.msra.mxu0 %v1131
      %1151 = vmatprep.subr.bf16.mxu0 0
      %1152 = vmatpush1.bf16.msra.mxu0 %v1130
      %1153 = vmatprep.subr.bf16.mxu0 0
      %1154 = vmatpush2.bf16.msra.mxu0 0
      %1155 = vmatprep.subr.bf16.mxu0 0
      %1156 = vmatpush2.bf16.msra.mxu0 0
      %1157 = vmatprep.subr.bf16.mxu0 0
      %1158 = vmatpush2.bf16.msra.mxu0 0
      %1159 = vmatprep.subr.bf16.mxu0 0
      %1160 = vmatpush2.bf16.msra.mxu0 0
      %1161 = vmatprep.subr.bf16.mxu0 0
      %1162 = vmatpush2.bf16.msra.mxu0 0
      %1163 = vmatprep.subr.bf16.mxu0 0
      %1164 = vmatpush2.bf16.msra.mxu0 0
      %1165 = vmatprep.subr.bf16.mxu0 0
      %1166 = vmatpush2.bf16.msra.mxu0 0
      %1167 = vmatprep.subr.bf16.mxu0 0
      %1168 = vmatpush2.bf16.msra.mxu0 0
      %1169 = vmatprep.mubr.bf16.mxu0 0
      %1170 = vmatmul.mubr.bf16.gmra.mxu0 %v1135
      %v1171 = vpop.f32.mrf.mxu0
      %v1172 = vadd.f32 %v1121, %v1171
      %v1173 = vpop.f32.mrf.mxu0
      %v1174 = vpop.f32.mrf.mxu0
      %v1175 = vpop.f32.mrf.mxu0
      %1176 = vdwg.mxu0
      %v1177 = vadd.f32 %v1172, %v343
      %v1178 = vsel %vm319, %v1177, 0.0
      %1179 = vadd.xlane.f32.xlu0 %v1178
      %v1180 = vpop.xlane.xlu0 %1179
      %v1181 = vmul.f32 %v1180, %v323
      %v1182 = vsub.f32 %v1177, %v1181
      %v1183 = vmul.f32 %v1182, %v1182
      %v1184 = vsel %vm319, %v1183, 0.0
      %1185 = vadd.xlane.f32.xlu0 %v1184
      %v1186 = vpop.xlane.xlu0 %1185
      %v1187 = vmul.f32 %v1186, %v323
      %v1188 = vadd.f32 %v1187, 1e-12
      %v1189 = vrsqrt.pop %v1188
      %v1190 = vmul.f32 %v1182, %v1189
      %v1191 = vlaneseq
      %v1192 = vshrl.u32 %v1191, 7
      %v1193 = vsub.s32 2, %v1192
      %v1194 = vrot.slane %v365, %v1193
      %v1195 = vmul.f32 %v1190, %v1194
      %v1196 = vlaneseq
      %v1197 = vshrl.u32 %v1196, 7
      %v1198 = vsub.s32 3, %v1197
      %v1199 = vrot.slane %v365, %v1198
      %v1200 = vadd.f32 %v1195, %v1199
      %v1201 = vpack.c.bf16 %v1200, %v1200
      %v1202 = vlaneseq
      %v1203 = vshrl.u32 %v1202, 7
      %v1204 = vsub.s32 4, %v1203
      %v1205 = vrot.slane %v365, %v1204
      %v1210 = vunpack.c.l.b16 %v353
      %v1211 = vunpack.c.l.b16 %v354
      %v1212 = vunpack.c.l.b16 %v355
      %v1213 = vunpack.c.l.b16 %v356
      %v1214 = vpack.c.b16 %v1211, %v1210
      %v1215 = vpack.c.b16 %v1213, %v1212
      %v1219 = vsel %vm319, %v1201, 0
      %1221 = vmatprep.subr.bf16.mxu0 0
      %1222 = vmatpush1.bf16.msra.mxu0 0
      %1223 = vmatprep.subr.bf16.mxu0 0
      %1224 = vmatpush1.bf16.msra.mxu0 0
      %1225 = vmatprep.subr.bf16.mxu0 0
      %1226 = vmatpush1.bf16.msra.mxu0 0
      %1227 = vmatprep.subr.bf16.mxu0 0
      %1228 = vmatpush1.bf16.msra.mxu0 0
      %1229 = vmatprep.subr.bf16.mxu0 0
      %1230 = vmatpush1.bf16.msra.mxu0 0
      %1231 = vmatprep.subr.bf16.mxu0 0
      %1232 = vmatpush1.bf16.msra.mxu0 0
      %1233 = vmatprep.subr.bf16.mxu0 0
      %1234 = vmatpush1.bf16.msra.mxu0 %v1215
      %1235 = vmatprep.subr.bf16.mxu0 0
      %1236 = vmatpush1.bf16.msra.mxu0 %v1214
      %1237 = vmatprep.subr.bf16.mxu0 0
      %1238 = vmatpush2.bf16.msra.mxu0 0
      %1239 = vmatprep.subr.bf16.mxu0 0
      %1240 = vmatpush2.bf16.msra.mxu0 0
      %1241 = vmatprep.subr.bf16.mxu0 0
      %1242 = vmatpush2.bf16.msra.mxu0 0
      %1243 = vmatprep.subr.bf16.mxu0 0
      %1244 = vmatpush2.bf16.msra.mxu0 0
      %1245 = vmatprep.subr.bf16.mxu0 0
      %1246 = vmatpush2.bf16.msra.mxu0 0
      %1247 = vmatprep.subr.bf16.mxu0 0
      %1248 = vmatpush2.bf16.msra.mxu0 0
      %1249 = vmatprep.subr.bf16.mxu0 0
      %1250 = vmatpush2.bf16.msra.mxu0 0
      %1251 = vmatprep.subr.bf16.mxu0 0
      %1252 = vmatpush2.bf16.msra.mxu0 0
      %1253 = vmatprep.mubr.bf16.mxu0 0
      %1254 = vmatmul.mubr.bf16.gmra.mxu0 %v1219
      %v1255 = vpop.f32.mrf.mxu0
      %v1256 = vadd.f32 %v1205, %v1255
      %v1257 = vpop.f32.mrf.mxu0
      %v1258 = vpop.f32.mrf.mxu0
      %v1259 = vpop.f32.mrf.mxu0
      %1260 = vdwg.mxu0
      %v1261 = vmul.f32 %v1256, %v1256
      %v1262 = vmul.f32 %v1256, %v1261
      %v1263 = vmul.f32 %v1262, 0.044715
      %v1264 = vadd.f32 %v1256, %v1263
      %v1265 = vmul.f32 %v1264, 0.7978846
      %v1266 = vtanh.pop %v1265
      %v1267 = vadd.f32 %v1266, 1.0
      %v1268 = vmul.f32 %v1267, 0.5
      %v1269 = vmul.f32 %v1256, %v1268
      %v1270 = vpack.c.bf16 %v1269, %v1269
      %v1271 = vlaneseq
      %v1272 = vshrl.u32 %v1271, 7
      %v1273 = vsub.s32 5, %v1272
      %v1274 = vrot.slane %v365, %v1273
      %v1283 = vunpack.c.l.b16 %v357
      %v1284 = vunpack.c.l.b16 %v358
      %v1285 = vunpack.c.l.b16 %v359
      %v1286 = vunpack.c.l.b16 %v360
      %v1287 = vunpack.c.l.b16 %v361
      %v1288 = vunpack.c.l.b16 %v362
      %v1289 = vunpack.c.l.b16 %v363
      %v1290 = vunpack.c.l.b16 %v364
      %v1291 = vpack.c.b16 %v1284, %v1283
      %v1292 = vpack.c.b16 %v1286, %v1285
      %v1293 = vpack.c.b16 %v1288, %v1287
      %v1294 = vpack.c.b16 %v1290, %v1289
      %vm1299 = vcmask 523264
      %v1301 = vsel %vm1299, %v1270, 0
      %1303 = vmatprep.subr.bf16.mxu0 0
      %1304 = vmatpush1.bf16.msra.mxu0 0
      %1305 = vmatprep.subr.bf16.mxu0 0
      %1306 = vmatpush1.bf16.msra.mxu0 0
      %1307 = vmatprep.subr.bf16.mxu0 0
      %1308 = vmatpush1.bf16.msra.mxu0 0
      %1309 = vmatprep.subr.bf16.mxu0 0
      %1310 = vmatpush1.bf16.msra.mxu0 0
      %1311 = vmatprep.subr.bf16.mxu0 0
      %1312 = vmatpush1.bf16.msra.mxu0 %v1294
      %1313 = vmatprep.subr.bf16.mxu0 0
      %1314 = vmatpush1.bf16.msra.mxu0 %v1293
      %1315 = vmatprep.subr.bf16.mxu0 0
      %1316 = vmatpush1.bf16.msra.mxu0 %v1292
      %1317 = vmatprep.subr.bf16.mxu0 0
      %1318 = vmatpush1.bf16.msra.mxu0 %v1291
      %1319 = vmatprep.subr.bf16.mxu0 0
      %1320 = vmatpush2.bf16.msra.mxu0 0
      %1321 = vmatprep.subr.bf16.mxu0 0
      %1322 = vmatpush2.bf16.msra.mxu0 0
      %1323 = vmatprep.subr.bf16.mxu0 0
      %1324 = vmatpush2.bf16.msra.mxu0 0
      %1325 = vmatprep.subr.bf16.mxu0 0
      %1326 = vmatpush2.bf16.msra.mxu0 0
      %1327 = vmatprep.subr.bf16.mxu0 0
      %1328 = vmatpush2.bf16.msra.mxu0 0
      %1329 = vmatprep.subr.bf16.mxu0 0
      %1330 = vmatpush2.bf16.msra.mxu0 0
      %1331 = vmatprep.subr.bf16.mxu0 0
      %1332 = vmatpush2.bf16.msra.mxu0 0
      %1333 = vmatprep.subr.bf16.mxu0 0
      %1334 = vmatpush2.bf16.msra.mxu0 0
      %1335 = vmatprep.mubr.bf16.mxu0 0
      %1336 = vmatmul.mubr.bf16.gmra.mxu0 %v1301
      %v1337 = vpop.f32.mrf.mxu0
      %v1338 = vadd.f32 %v1274, %v1337
      %v1339 = vpop.f32.mrf.mxu0
      %v1340 = vpop.f32.mrf.mxu0
      %v1341 = vpop.f32.mrf.mxu0
      %1342 = vdwg.mxu0
      %v1343 = vadd.f32 %v1338, %v1200
      %v1344 = vsel %vm319, %v1343, 0.0
      %1345 = vadd.xlane.f32.xlu0 %v1344
      %v1346 = vpop.xlane.xlu0 %1345
      %v1347 = vmul.f32 %v1346, %v323
      %v1348 = vsub.f32 %v1343, %v1347
      %v1349 = vmul.f32 %v1348, %v1348
      %v1350 = vsel %vm319, %v1349, 0.0
      %1351 = vadd.xlane.f32.xlu0 %v1350
      %v1352 = vpop.xlane.xlu0 %1351
      %v1353 = vmul.f32 %v1352, %v323
      %v1354 = vadd.f32 %v1353, 1e-12
      %v1355 = vrsqrt.pop %v1354
      %v1356 = vmul.f32 %v1348, %v1355
      %v1357 = vlaneseq
      %v1358 = vshrl.u32 %v1357, 7
      %v1359 = vsub.s32 6, %v1358
      %v1360 = vrot.slane %v365, %v1359
      %v1361 = vmul.f32 %v1356, %v1360
      %v1362 = vlaneseq
      %v1363 = vshrl.u32 %v1362, 7
      %v1364 = vsub.s32 7, %v1363
      %v1365 = vrot.slane %v365, %v1364
      %v1366 = vadd.f32 %v1361, %v1365
      %s1367 = scalar_lea.vmem %s3, 16
      %v1368 = vld [vmem:[%s1367] sm:$0xf]
      %v1369 = vld [vmem:[%s1367 + $0x4] sm:$0xf]
      %v1370 = vld [vmem:[%s1367 + $0x8] sm:$0xf]
      %v1371 = vld [vmem:[%s1367 + $0xc] sm:$0xf]
      %s1372 = scalar_lea.vmem %s4, 16
      %v1373 = vld [vmem:[%s1372] sm:$0xf]
      %v1374 = vld [vmem:[%s1372 + $0x4] sm:$0xf]
      %v1375 = vld [vmem:[%s1372 + $0x8] sm:$0xf]
      %v1376 = vld [vmem:[%s1372 + $0xc] sm:$0xf]
      %s1377 = scalar_lea.vmem %s5, 16
      %v1378 = vld [vmem:[%s1377] sm:$0xf]
      %v1379 = vld [vmem:[%s1377 + $0x4] sm:$0xf]
      %v1380 = vld [vmem:[%s1377 + $0x8] sm:$0xf]
      %v1381 = vld [vmem:[%s1377 + $0xc] sm:$0xf]
      %s1382 = scalar_lea.vmem %s6, 32
      %v1383 = vld [vmem:[%s1382] sm:$0xf]
      %v1384 = vld [vmem:[%s1382 + $0x4] sm:$0xf]
      %v1385 = vld [vmem:[%s1382 + $0x8] sm:$0xf]
      %v1386 = vld [vmem:[%s1382 + $0xc] sm:$0xf]
      %v1387 = vld [vmem:[%s1382 + $0x10] sm:$0xf]
      %v1388 = vld [vmem:[%s1382 + $0x14] sm:$0xf]
      %v1389 = vld [vmem:[%s1382 + $0x18] sm:$0xf]
      %v1390 = vld [vmem:[%s1382 + $0x1c] sm:$0xf]
      %s1391 = scalar_lea.vmem %s7, 8
      %v1392 = vld [vmem:[%s1391] sm:$0xff]
      %v1393 = vpack.c.bf16 %v1366, %v1366
      %v1394 = vlaneseq
      %v1395 = vshrl.u32 %v1394, 7
      %v1396 = vsub.s32 0, %v1395
      %v1397 = vrot.slane %v1392, %v1396
      %v1402 = vunpack.c.l.b16 %v1368
      %v1403 = vunpack.c.l.b16 %v1369
      %v1404 = vunpack.c.l.b16 %v1370
      %v1405 = vunpack.c.l.b16 %v1371
      %v1406 = vpack.c.b16 %v1403, %v1402
      %v1407 = vpack.c.b16 %v1405, %v1404
      %v1411 = vsel %vm319, %v1393, 0
      %1413 = vmatprep.subr.bf16.mxu0 0
      %1414 = vmatpush1.bf16.msra.mxu0 0
      %1415 = vmatprep.subr.bf16.mxu0 0
      %1416 = vmatpush1.bf16.msra.mxu0 0
      %1417 = vmatprep.subr.bf16.mxu0 0
      %1418 = vmatpush1.bf16.msra.mxu0 0
      %1419 = vmatprep.subr.bf16.mxu0 0
      %1420 = vmatpush1.bf16.msra.mxu0 0
      %1421 = vmatprep.subr.bf16.mxu0 0
      %1422 = vmatpush1.bf16.msra.mxu0 0
      %1423 = vmatprep.subr.bf16.mxu0 0
      %1424 = vmatpush1.bf16.msra.mxu0 0
      %1425 = vmatprep.subr.bf16.mxu0 0
      %1426 = vmatpush1.bf16.msra.mxu0 %v1407
      %1427 = vmatprep.subr.bf16.mxu0 0
      %1428 = vmatpush1.bf16.msra.mxu0 %v1406
      %1429 = vmatprep.subr.bf16.mxu0 0
      %1430 = vmatpush2.bf16.msra.mxu0 0
      %1431 = vmatprep.subr.bf16.mxu0 0
      %1432 = vmatpush2.bf16.msra.mxu0 0
      %1433 = vmatprep.subr.bf16.mxu0 0
      %1434 = vmatpush2.bf16.msra.mxu0 0
      %1435 = vmatprep.subr.bf16.mxu0 0
      %1436 = vmatpush2.bf16.msra.mxu0 0
      %1437 = vmatprep.subr.bf16.mxu0 0
      %1438 = vmatpush2.bf16.msra.mxu0 0
      %1439 = vmatprep.subr.bf16.mxu0 0
      %1440 = vmatpush2.bf16.msra.mxu0 0
      %1441 = vmatprep.subr.bf16.mxu0 0
      %1442 = vmatpush2.bf16.msra.mxu0 0
      %1443 = vmatprep.subr.bf16.mxu0 0
      %1444 = vmatpush2.bf16.msra.mxu0 0
      %1445 = vmatprep.mubr.bf16.mxu0 0
      %1446 = vmatmul.mubr.bf16.gmra.mxu0 %v1411
      %v1447 = vpop.f32.mrf.mxu0
      %v1448 = vadd.f32 %v1397, %v1447
      %v1449 = vpop.f32.mrf.mxu0
      %v1450 = vpop.f32.mrf.mxu0
      %v1451 = vpop.f32.mrf.mxu0
      %1452 = vdwg.mxu0
      %1454 = vrot.lane.b32.xlu0 %v1448, 120
      %v1455 = vpop.permute.xlu0 %1454
      %1456 = vrot.lane.b32.xlu0 %v1448, 112
      %v1457 = vpop.permute.xlu0 %1456
      %1458 = vrot.lane.b32.xlu0 %v1448, 104
      %v1459 = vpop.permute.xlu0 %1458
      %1460 = vrot.lane.b32.xlu0 %v1448, 96
      %v1461 = vpop.permute.xlu0 %1460
      %v1462 = vsel %vm435, %v1448, 0
      %v1464 = vsel %vm435, %v1461, 0
      %1466 = vmatprep.subr.mxu0 0.0
      %1467 = vmatpush1.xpose.msra.mxu0 0.0
      %1468 = vmatprep.subr.mxu0 0.0
      %1469 = vmatpush1.xpose.msra.mxu0 0.0
      %1470 = vmatprep.subr.mxu0 0.0
      %1471 = vmatpush1.xpose.msra.mxu0 0.0
      %1472 = vmatprep.subr.mxu0 0.0
      %1473 = vmatpush1.xpose.msra.mxu0 0.0
      %1474 = vmatprep.subr.mxu0 0.0
      %1475 = vmatpush1.xpose.msra.mxu0 0.0
      %1476 = vmatprep.subr.mxu0 0.0
      %1477 = vmatpush1.xpose.msra.mxu0 0.0
      %1478 = vmatprep.subr.mxu0 0.0
      %1479 = vmatpush1.xpose.msra.mxu0 0.0
      %1480 = vmatprep.subr.mxu0 0.0
      %1481 = vmatpush1.xpose.msra.mxu0 0.0
      %1482 = vmatprep.subr.mxu0 0.0
      %1483 = vmatpush1.xpose.msra.mxu0 0.0
      %1484 = vmatprep.subr.mxu0 0.0
      %1485 = vmatpush1.xpose.msra.mxu0 0.0
      %1486 = vmatprep.subr.mxu0 0.0
      %1487 = vmatpush1.xpose.msra.mxu0 0.0
      %1488 = vmatprep.subr.mxu0 0.0
      %1489 = vmatpush1.xpose.msra.mxu0 0.0
      %1490 = vmatprep.subr.mxu0 0.0
      %1491 = vmatpush1.xpose.msra.mxu0 0.0
      %1492 = vmatprep.subr.mxu0 0.0
      %1493 = vmatpush1.xpose.msra.mxu0 0.0
      %1494 = vmatprep.subr.mxu0 0.0
      %1495 = vmatpush1.xpose.msra.mxu0 0.0
      %1496 = vmatprep.subr.mxu0 0.0
      %1497 = vmatpush1.xpose.msra.mxu0 %v1464
      %1498 = vmatprep.subr.mxu0 0.0
      %1499 = vmatpush2.xpose.msra.mxu0 0.0
      %1500 = vmatprep.subr.mxu0 0.0
      %1501 = vmatpush2.xpose.msra.mxu0 0.0
      %1502 = vmatprep.subr.mxu0 0.0
      %1503 = vmatpush2.xpose.msra.mxu0 0.0
      %1504 = vmatprep.subr.mxu0 0.0
      %1505 = vmatpush2.xpose.msra.mxu0 0.0
      %1506 = vmatprep.subr.mxu0 0.0
      %1507 = vmatpush2.xpose.msra.mxu0 0.0
      %1508 = vmatprep.subr.mxu0 0.0
      %1509 = vmatpush2.xpose.msra.mxu0 0.0
      %1510 = vmatprep.subr.mxu0 0.0
      %1511 = vmatpush2.xpose.msra.mxu0 0.0
      %1512 = vmatprep.subr.mxu0 0.0
      %1513 = vmatpush2.xpose.msra.mxu0 0.0
      %1514 = vmatprep.subr.mxu0 0.0
      %1515 = vmatpush2.xpose.msra.mxu0 0.0
      %1516 = vmatprep.subr.mxu0 0.0
      %1517 = vmatpush2.xpose.msra.mxu0 0.0
      %1518 = vmatprep.subr.mxu0 0.0
      %1519 = vmatpush2.xpose.msra.mxu0 0.0
      %1520 = vmatprep.subr.mxu0 0.0
      %1521 = vmatpush2.xpose.msra.mxu0 0.0
      %1522 = vmatprep.subr.mxu0 0.0
      %1523 = vmatpush2.xpose.msra.mxu0 0.0
      %1524 = vmatprep.subr.mxu0 0.0
      %1525 = vmatpush2.xpose.msra.mxu0 0.0
      %1526 = vmatprep.subr.mxu0 0.0
      %1527 = vmatpush2.xpose.msra.mxu0 0.0
      %1528 = vmatprep.subr.mxu0 0.0
      %1529 = vmatpush2.xpose.msra.mxu0 0.0
      %1530 = vmatprep.mubr.f32.mxu0 0.0
      %1531 = vmatmul.mubr.f32.gmra.mxu0 %v1462
      %v1532 = vpop.f32.mrf.mxu0
      %v1533 = vadd.f32 0.0, %v1532
      %v1534 = vpop.f32.mrf.mxu0
      %1535 = vdwg.mxu0
      %1536 = vrot.lane.b32.xlu0 %v1455, 96
      %v1537 = vpop.permute.xlu0 %1536
      %v1538 = vsel %vm435, %v1455, 0
      %v1540 = vsel %vm435, %v1537, 0
      %1542 = vmatprep.subr.mxu0 0.0
      %1543 = vmatpush1.xpose.msra.mxu0 0.0
      %1544 = vmatprep.subr.mxu0 0.0
      %1545 = vmatpush1.xpose.msra.mxu0 0.0
      %1546 = vmatprep.subr.mxu0 0.0
      %1547 = vmatpush1.xpose.msra.mxu0 0.0
      %1548 = vmatprep.subr.mxu0 0.0
      %1549 = vmatpush1.xpose.msra.mxu0 0.0
      %1550 = vmatprep.subr.mxu0 0.0
      %1551 = vmatpush1.xpose.msra.mxu0 0.0
      %1552 = vmatprep.subr.mxu0 0.0
      %1553 = vmatpush1.xpose.msra.mxu0 0.0
      %1554 = vmatprep.subr.mxu0 0.0
      %1555 = vmatpush1.xpose.msra.mxu0 0.0
      %1556 = vmatprep.subr.mxu0 0.0
      %1557 = vmatpush1.xpose.msra.mxu0 0.0
      %1558 = vmatprep.subr.mxu0 0.0
      %1559 = vmatpush1.xpose.msra.mxu0 0.0
      %1560 = vmatprep.subr.mxu0 0.0
      %1561 = vmatpush1.xpose.msra.mxu0 0.0
      %1562 = vmatprep.subr.mxu0 0.0
      %1563 = vmatpush1.xpose.msra.mxu0 0.0
      %1564 = vmatprep.subr.mxu0 0.0
      %1565 = vmatpush1.xpose.msra.mxu0 0.0
      %1566 = vmatprep.subr.mxu0 0.0
      %1567 = vmatpush1.xpose.msra.mxu0 0.0
      %1568 = vmatprep.subr.mxu0 0.0
      %1569 = vmatpush1.xpose.msra.mxu0 0.0
      %1570 = vmatprep.subr.mxu0 0.0
      %1571 = vmatpush1.xpose.msra.mxu0 0.0
      %1572 = vmatprep.subr.mxu0 0.0
      %1573 = vmatpush1.xpose.msra.mxu0 %v1540
      %1574 = vmatprep.subr.mxu0 0.0
      %1575 = vmatpush2.xpose.msra.mxu0 0.0
      %1576 = vmatprep.subr.mxu0 0.0
      %1577 = vmatpush2.xpose.msra.mxu0 0.0
      %1578 = vmatprep.subr.mxu0 0.0
      %1579 = vmatpush2.xpose.msra.mxu0 0.0
      %1580 = vmatprep.subr.mxu0 0.0
      %1581 = vmatpush2.xpose.msra.mxu0 0.0
      %1582 = vmatprep.subr.mxu0 0.0
      %1583 = vmatpush2.xpose.msra.mxu0 0.0
      %1584 = vmatprep.subr.mxu0 0.0
      %1585 = vmatpush2.xpose.msra.mxu0 0.0
      %1586 = vmatprep.subr.mxu0 0.0
      %1587 = vmatpush2.xpose.msra.mxu0 0.0
      %1588 = vmatprep.subr.mxu0 0.0
      %1589 = vmatpush2.xpose.msra.mxu0 0.0
      %1590 = vmatprep.subr.mxu0 0.0
      %1591 = vmatpush2.xpose.msra.mxu0 0.0
      %1592 = vmatprep.subr.mxu0 0.0
      %1593 = vmatpush2.xpose.msra.mxu0 0.0
      %1594 = vmatprep.subr.mxu0 0.0
      %1595 = vmatpush2.xpose.msra.mxu0 0.0
      %1596 = vmatprep.subr.mxu0 0.0
      %1597 = vmatpush2.xpose.msra.mxu0 0.0
      %1598 = vmatprep.subr.mxu0 0.0
      %1599 = vmatpush2.xpose.msra.mxu0 0.0
      %1600 = vmatprep.subr.mxu0 0.0
      %1601 = vmatpush2.xpose.msra.mxu0 0.0
      %1602 = vmatprep.subr.mxu0 0.0
      %1603 = vmatpush2.xpose.msra.mxu0 0.0
      %1604 = vmatprep.subr.mxu0 0.0
      %1605 = vmatpush2.xpose.msra.mxu0 0.0
      %1606 = vmatprep.mubr.f32.mxu0 0.0
      %1607 = vmatmul.mubr.f32.gmra.mxu0 %v1538
      %v1608 = vpop.f32.mrf.mxu0
      %v1609 = vadd.f32 0.0, %v1608
      %v1610 = vpop.f32.mrf.mxu0
      %1611 = vdwg.mxu0
      %1612 = vrot.lane.b32.xlu0 %v1457, 96
      %v1613 = vpop.permute.xlu0 %1612
      %v1614 = vsel %vm435, %v1457, 0
      %v1616 = vsel %vm435, %v1613, 0
      %1618 = vmatprep.subr.mxu0 0.0
      %1619 = vmatpush1.xpose.msra.mxu0 0.0
      %1620 = vmatprep.subr.mxu0 0.0
      %1621 = vmatpush1.xpose.msra.mxu0 0.0
      %1622 = vmatprep.subr.mxu0 0.0
      %1623 = vmatpush1.xpose.msra.mxu0 0.0
      %1624 = vmatprep.subr.mxu0 0.0
      %1625 = vmatpush1.xpose.msra.mxu0 0.0
      %1626 = vmatprep.subr.mxu0 0.0
      %1627 = vmatpush1.xpose.msra.mxu0 0.0
      %1628 = vmatprep.subr.mxu0 0.0
      %1629 = vmatpush1.xpose.msra.mxu0 0.0
      %1630 = vmatprep.subr.mxu0 0.0
      %1631 = vmatpush1.xpose.msra.mxu0 0.0
      %1632 = vmatprep.subr.mxu0 0.0
      %1633 = vmatpush1.xpose.msra.mxu0 0.0
      %1634 = vmatprep.subr.mxu0 0.0
      %1635 = vmatpush1.xpose.msra.mxu0 0.0
      %1636 = vmatprep.subr.mxu0 0.0
      %1637 = vmatpush1.xpose.msra.mxu0 0.0
      %1638 = vmatprep.subr.mxu0 0.0
      %1639 = vmatpush1.xpose.msra.mxu0 0.0
      %1640 = vmatprep.subr.mxu0 0.0
      %1641 = vmatpush1.xpose.msra.mxu0 0.0
      %1642 = vmatprep.subr.mxu0 0.0
      %1643 = vmatpush1.xpose.msra.mxu0 0.0
      %1644 = vmatprep.subr.mxu0 0.0
      %1645 = vmatpush1.xpose.msra.mxu0 0.0
      %1646 = vmatprep.subr.mxu0 0.0
      %1647 = vmatpush1.xpose.msra.mxu0 0.0
      %1648 = vmatprep.subr.mxu0 0.0
      %1649 = vmatpush1.xpose.msra.mxu0 %v1616
      %1650 = vmatprep.subr.mxu0 0.0
      %1651 = vmatpush2.xpose.msra.mxu0 0.0
      %1652 = vmatprep.subr.mxu0 0.0
      %1653 = vmatpush2.xpose.msra.mxu0 0.0
      %1654 = vmatprep.subr.mxu0 0.0
      %1655 = vmatpush2.xpose.msra.mxu0 0.0
      %1656 = vmatprep.subr.mxu0 0.0
      %1657 = vmatpush2.xpose.msra.mxu0 0.0
      %1658 = vmatprep.subr.mxu0 0.0
      %1659 = vmatpush2.xpose.msra.mxu0 0.0
      %1660 = vmatprep.subr.mxu0 0.0
      %1661 = vmatpush2.xpose.msra.mxu0 0.0
      %1662 = vmatprep.subr.mxu0 0.0
      %1663 = vmatpush2.xpose.msra.mxu0 0.0
      %1664 = vmatprep.subr.mxu0 0.0
      %1665 = vmatpush2.xpose.msra.mxu0 0.0
      %1666 = vmatprep.subr.mxu0 0.0
      %1667 = vmatpush2.xpose.msra.mxu0 0.0
      %1668 = vmatprep.subr.mxu0 0.0
      %1669 = vmatpush2.xpose.msra.mxu0 0.0
      %1670 = vmatprep.subr.mxu0 0.0
      %1671 = vmatpush2.xpose.msra.mxu0 0.0
      %1672 = vmatprep.subr.mxu0 0.0
      %1673 = vmatpush2.xpose.msra.mxu0 0.0
      %1674 = vmatprep.subr.mxu0 0.0
      %1675 = vmatpush2.xpose.msra.mxu0 0.0
      %1676 = vmatprep.subr.mxu0 0.0
      %1677 = vmatpush2.xpose.msra.mxu0 0.0
      %1678 = vmatprep.subr.mxu0 0.0
      %1679 = vmatpush2.xpose.msra.mxu0 0.0
      %1680 = vmatprep.subr.mxu0 0.0
      %1681 = vmatpush2.xpose.msra.mxu0 0.0
      %1682 = vmatprep.mubr.f32.mxu0 0.0
      %1683 = vmatmul.mubr.f32.gmra.mxu0 %v1614
      %v1684 = vpop.f32.mrf.mxu0
      %v1685 = vadd.f32 0.0, %v1684
      %v1686 = vpop.f32.mrf.mxu0
      %1687 = vdwg.mxu0
      %1688 = vrot.lane.b32.xlu0 %v1459, 96
      %v1689 = vpop.permute.xlu0 %1688
      %v1690 = vsel %vm435, %v1459, 0
      %v1692 = vsel %vm435, %v1689, 0
      %1694 = vmatprep.subr.mxu0 0.0
      %1695 = vmatpush1.xpose.msra.mxu0 0.0
      %1696 = vmatprep.subr.mxu0 0.0
      %1697 = vmatpush1.xpose.msra.mxu0 0.0
      %1698 = vmatprep.subr.mxu0 0.0
      %1699 = vmatpush1.xpose.msra.mxu0 0.0
      %1700 = vmatprep.subr.mxu0 0.0
      %1701 = vmatpush1.xpose.msra.mxu0 0.0
      %1702 = vmatprep.subr.mxu0 0.0
      %1703 = vmatpush1.xpose.msra.mxu0 0.0
      %1704 = vmatprep.subr.mxu0 0.0
      %1705 = vmatpush1.xpose.msra.mxu0 0.0
      %1706 = vmatprep.subr.mxu0 0.0
      %1707 = vmatpush1.xpose.msra.mxu0 0.0
      %1708 = vmatprep.subr.mxu0 0.0
      %1709 = vmatpush1.xpose.msra.mxu0 0.0
      %1710 = vmatprep.subr.mxu0 0.0
      %1711 = vmatpush1.xpose.msra.mxu0 0.0
      %1712 = vmatprep.subr.mxu0 0.0
      %1713 = vmatpush1.xpose.msra.mxu0 0.0
      %1714 = vmatprep.subr.mxu0 0.0
      %1715 = vmatpush1.xpose.msra.mxu0 0.0
      %1716 = vmatprep.subr.mxu0 0.0
      %1717 = vmatpush1.xpose.msra.mxu0 0.0
      %1718 = vmatprep.subr.mxu0 0.0
      %1719 = vmatpush1.xpose.msra.mxu0 0.0
      %1720 = vmatprep.subr.mxu0 0.0
      %1721 = vmatpush1.xpose.msra.mxu0 0.0
      %1722 = vmatprep.subr.mxu0 0.0
      %1723 = vmatpush1.xpose.msra.mxu0 0.0
      %1724 = vmatprep.subr.mxu0 0.0
      %1725 = vmatpush1.xpose.msra.mxu0 %v1692
      %1726 = vmatprep.subr.mxu0 0.0
      %1727 = vmatpush2.xpose.msra.mxu0 0.0
      %1728 = vmatprep.subr.mxu0 0.0
      %1729 = vmatpush2.xpose.msra.mxu0 0.0
      %1730 = vmatprep.subr.mxu0 0.0
      %1731 = vmatpush2.xpose.msra.mxu0 0.0
      %1732 = vmatprep.subr.mxu0 0.0
      %1733 = vmatpush2.xpose.msra.mxu0 0.0
      %1734 = vmatprep.subr.mxu0 0.0
      %1735 = vmatpush2.xpose.msra.mxu0 0.0
      %1736 = vmatprep.subr.mxu0 0.0
      %1737 = vmatpush2.xpose.msra.mxu0 0.0
      %1738 = vmatprep.subr.mxu0 0.0
      %1739 = vmatpush2.xpose.msra.mxu0 0.0
      %1740 = vmatprep.subr.mxu0 0.0
      %1741 = vmatpush2.xpose.msra.mxu0 0.0
      %1742 = vmatprep.subr.mxu0 0.0
      %1743 = vmatpush2.xpose.msra.mxu0 0.0
      %1744 = vmatprep.subr.mxu0 0.0
      %1745 = vmatpush2.xpose.msra.mxu0 0.0
      %1746 = vmatprep.subr.mxu0 0.0
      %1747 = vmatpush2.xpose.msra.mxu0 0.0
      %1748 = vmatprep.subr.mxu0 0.0
      %1749 = vmatpush2.xpose.msra.mxu0 0.0
      %1750 = vmatprep.subr.mxu0 0.0
      %1751 = vmatpush2.xpose.msra.mxu0 0.0
      %1752 = vmatprep.subr.mxu0 0.0
      %1753 = vmatpush2.xpose.msra.mxu0 0.0
      %1754 = vmatprep.subr.mxu0 0.0
      %1755 = vmatpush2.xpose.msra.mxu0 0.0
      %1756 = vmatprep.subr.mxu0 0.0
      %1757 = vmatpush2.xpose.msra.mxu0 0.0
      %1758 = vmatprep.mubr.f32.mxu0 0.0
      %1759 = vmatmul.mubr.f32.gmra.mxu0 %v1690
      %v1760 = vpop.f32.mrf.mxu0
      %v1761 = vadd.f32 0.0, %v1760
      %v1762 = vpop.f32.mrf.mxu0
      %1763 = vdwg.mxu0
      %v1764 = vmul.f32 %v1533, 0.35355338
      %v1765 = vmul.f32 %v1609, 0.35355338
      %v1766 = vmul.f32 %v1685, 0.35355338
      %v1767 = vmul.f32 %v1761, 0.35355338
      %v1768 = vadd.f32 %v1764, %v746
      %v1769 = vadd.f32 %v1765, %v746
      %v1770 = vadd.f32 %v1766, %v746
      %v1771 = vadd.f32 %v1767, %v746
      %v1772 = vsel %vm435, %v1768, -inf
      %1773 = vmax.xlane.f32.xlu0 %v1772
      %v1774 = vpop.xlane.xlu0 %1773
      %v1775 = vsel %vm435, %v1769, -inf
      %1776 = vmax.xlane.f32.xlu0 %v1775
      %v1777 = vpop.xlane.xlu0 %1776
      %v1778 = vsel %vm435, %v1770, -inf
      %1779 = vmax.xlane.f32.xlu0 %v1778
      %v1780 = vpop.xlane.xlu0 %1779
      %v1781 = vsel %vm435, %v1771, -inf
      %1782 = vmax.xlane.f32.xlu0 %v1781
      %v1783 = vpop.xlane.xlu0 %1782
      %v1784 = vsub.f32 %v1768, %v1774
      %v1785 = vsub.f32 %v1769, %v1777
      %v1786 = vsub.f32 %v1770, %v1780
      %v1787 = vsub.f32 %v1771, %v1783
      %v1788 = vmul.f32 %v1784, 1.442695
      %v1789 = vpow.pop %v1788
      %v1790 = vmul.f32 %v1785, 1.442695
      %v1791 = vpow.pop %v1790
      %v1792 = vmul.f32 %v1786, 1.442695
      %v1793 = vpow.pop %v1792
      %v1794 = vmul.f32 %v1787, 1.442695
      %v1795 = vpow.pop %v1794
      %v1796 = vsel %vm435, %v1789, 0.0
      %1797 = vadd.xlane.f32.xlu0 %v1796
      %v1798 = vpop.xlane.xlu0 %1797
      %v1799 = vsel %vm435, %v1791, 0.0
      %1800 = vadd.xlane.f32.xlu0 %v1799
      %v1801 = vpop.xlane.xlu0 %1800
      %v1802 = vsel %vm435, %v1793, 0.0
      %1803 = vadd.xlane.f32.xlu0 %v1802
      %v1804 = vpop.xlane.xlu0 %1803
      %v1805 = vsel %vm435, %v1795, 0.0
      %1806 = vadd.xlane.f32.xlu0 %v1805
      %v1807 = vpop.xlane.xlu0 %1806
      %v1808 = vrcp.pop %v1798
      %v1809 = vrcp.pop %v1801
      %v1810 = vrcp.pop %v1804
      %v1811 = vrcp.pop %v1807
      %v1812 = vmul.f32 %v1789, %v1808
      %v1813 = vmul.f32 %v1791, %v1809
      %v1814 = vmul.f32 %v1793, %v1810
      %v1815 = vmul.f32 %v1795, %v1811
      %1816 = vrot.lane.b32.xlu0 %v1448, 64
      %v1817 = vpop.permute.xlu0 %1816
      %v1820 = vsel %vm435, %v1812, 0
      %1822 = vmatprep.subr.mxu0 0.0
      %1823 = vmatpush1.msra.mxu0 0.0
      %1824 = vmatprep.subr.mxu0 0.0
      %1825 = vmatpush1.msra.mxu0 0.0
      %1826 = vmatprep.subr.mxu0 0.0
      %1827 = vmatpush1.msra.mxu0 0.0
      %1828 = vmatprep.subr.mxu0 0.0
      %1829 = vmatpush1.msra.mxu0 0.0
      %1830 = vmatprep.subr.mxu0 0.0
      %1831 = vmatpush1.msra.mxu0 0.0
      %1832 = vmatprep.subr.mxu0 0.0
      %1833 = vmatpush1.msra.mxu0 0.0
      %1834 = vmatprep.subr.mxu0 0.0
      %1835 = vmatpush1.msra.mxu0 0.0
      %1836 = vmatprep.subr.mxu0 0.0
      %1837 = vmatpush1.msra.mxu0 0.0
      %1838 = vmatprep.subr.mxu0 0.0
      %1839 = vmatpush1.msra.mxu0 0.0
      %1840 = vmatprep.subr.mxu0 0.0
      %1841 = vmatpush1.msra.mxu0 0.0
      %1842 = vmatprep.subr.mxu0 0.0
      %1843 = vmatpush1.msra.mxu0 0.0
      %1844 = vmatprep.subr.mxu0 0.0
      %1845 = vmatpush1.msra.mxu0 0.0
      %1846 = vmatprep.subr.mxu0 0.0
      %1847 = vmatpush1.msra.mxu0 0.0
      %1848 = vmatprep.subr.mxu0 0.0
      %1849 = vmatpush1.msra.mxu0 0.0
      %1850 = vmatprep.subr.mxu0 0.0
      %1851 = vmatpush1.msra.mxu0 0.0
      %1852 = vmatprep.subr.mxu0 0.0
      %1853 = vmatpush1.msra.mxu0 %v1817
      %1854 = vmatprep.subr.mxu0 0.0
      %1855 = vmatpush2.msra.mxu0 0.0
      %1856 = vmatprep.subr.mxu0 0.0
      %1857 = vmatpush2.msra.mxu0 0.0
      %1858 = vmatprep.subr.mxu0 0.0
      %1859 = vmatpush2.msra.mxu0 0.0
      %1860 = vmatprep.subr.mxu0 0.0
      %1861 = vmatpush2.msra.mxu0 0.0
      %1862 = vmatprep.subr.mxu0 0.0
      %1863 = vmatpush2.msra.mxu0 0.0
      %1864 = vmatprep.subr.mxu0 0.0
      %1865 = vmatpush2.msra.mxu0 0.0
      %1866 = vmatprep.subr.mxu0 0.0
      %1867 = vmatpush2.msra.mxu0 0.0
      %1868 = vmatprep.subr.mxu0 0.0
      %1869 = vmatpush2.msra.mxu0 0.0
      %1870 = vmatprep.subr.mxu0 0.0
      %1871 = vmatpush2.msra.mxu0 0.0
      %1872 = vmatprep.subr.mxu0 0.0
      %1873 = vmatpush2.msra.mxu0 0.0
      %1874 = vmatprep.subr.mxu0 0.0
      %1875 = vmatpush2.msra.mxu0 0.0
      %1876 = vmatprep.subr.mxu0 0.0
      %1877 = vmatpush2.msra.mxu0 0.0
      %1878 = vmatprep.subr.mxu0 0.0
      %1879 = vmatpush2.msra.mxu0 0.0
      %1880 = vmatprep.subr.mxu0 0.0
      %1881 = vmatpush2.msra.mxu0 0.0
      %1882 = vmatprep.subr.mxu0 0.0
      %1883 = vmatpush2.msra.mxu0 0.0
      %1884 = vmatprep.subr.mxu0 0.0
      %1885 = vmatpush2.msra.mxu0 0.0
      %1886 = vmatprep.mubr.f32.mxu0 0.0
      %1887 = vmatmul.mubr.f32.gmra.mxu0 %v1820
      %v1888 = vpop.f32.mrf.mxu0
      %v1889 = vadd.f32 0.0, %v1888
      %v1890 = vpop.f32.mrf.mxu0
      %1891 = vdwg.mxu0
      %1892 = vrot.lane.b32.xlu0 %v1455, 64
      %v1893 = vpop.permute.xlu0 %1892
      %v1896 = vsel %vm435, %v1813, 0
      %1898 = vmatprep.subr.mxu0 0.0
      %1899 = vmatpush1.msra.mxu0 0.0
      %1900 = vmatprep.subr.mxu0 0.0
      %1901 = vmatpush1.msra.mxu0 0.0
      %1902 = vmatprep.subr.mxu0 0.0
      %1903 = vmatpush1.msra.mxu0 0.0
      %1904 = vmatprep.subr.mxu0 0.0
      %1905 = vmatpush1.msra.mxu0 0.0
      %1906 = vmatprep.subr.mxu0 0.0
      %1907 = vmatpush1.msra.mxu0 0.0
      %1908 = vmatprep.subr.mxu0 0.0
      %1909 = vmatpush1.msra.mxu0 0.0
      %1910 = vmatprep.subr.mxu0 0.0
      %1911 = vmatpush1.msra.mxu0 0.0
      %1912 = vmatprep.subr.mxu0 0.0
      %1913 = vmatpush1.msra.mxu0 0.0
      %1914 = vmatprep.subr.mxu0 0.0
      %1915 = vmatpush1.msra.mxu0 0.0
      %1916 = vmatprep.subr.mxu0 0.0
      %1917 = vmatpush1.msra.mxu0 0.0
      %1918 = vmatprep.subr.mxu0 0.0
      %1919 = vmatpush1.msra.mxu0 0.0
      %1920 = vmatprep.subr.mxu0 0.0
      %1921 = vmatpush1.msra.mxu0 0.0
      %1922 = vmatprep.subr.mxu0 0.0
      %1923 = vmatpush1.msra.mxu0 0.0
      %1924 = vmatprep.subr.mxu0 0.0
      %1925 = vmatpush1.msra.mxu0 0.0
      %1926 = vmatprep.subr.mxu0 0.0
      %1927 = vmatpush1.msra.mxu0 0.0
      %1928 = vmatprep.subr.mxu0 0.0
      %1929 = vmatpush1.msra.mxu0 %v1893
      %1930 = vmatprep.subr.mxu0 0.0
      %1931 = vmatpush2.msra.mxu0 0.0
      %1932 = vmatprep.subr.mxu0 0.0
      %1933 = vmatpush2.msra.mxu0 0.0
      %1934 = vmatprep.subr.mxu0 0.0
      %1935 = vmatpush2.msra.mxu0 0.0
      %1936 = vmatprep.subr.mxu0 0.0
      %1937 = vmatpush2.msra.mxu0 0.0
      %1938 = vmatprep.subr.mxu0 0.0
      %1939 = vmatpush2.msra.mxu0 0.0
      %1940 = vmatprep.subr.mxu0 0.0
      %1941 = vmatpush2.msra.mxu0 0.0
      %1942 = vmatprep.subr.mxu0 0.0
      %1943 = vmatpush2.msra.mxu0 0.0
      %1944 = vmatprep.subr.mxu0 0.0
      %1945 = vmatpush2.msra.mxu0 0.0
      %1946 = vmatprep.subr.mxu0 0.0
      %1947 = vmatpush2.msra.mxu0 0.0
      %1948 = vmatprep.subr.mxu0 0.0
      %1949 = vmatpush2.msra.mxu0 0.0
      %1950 = vmatprep.subr.mxu0 0.0
      %1951 = vmatpush2.msra.mxu0 0.0
      %1952 = vmatprep.subr.mxu0 0.0
      %1953 = vmatpush2.msra.mxu0 0.0
      %1954 = vmatprep.subr.mxu0 0.0
      %1955 = vmatpush2.msra.mxu0 0.0
      %1956 = vmatprep.subr.mxu0 0.0
      %1957 = vmatpush2.msra.mxu0 0.0
      %1958 = vmatprep.subr.mxu0 0.0
      %1959 = vmatpush2.msra.mxu0 0.0
      %1960 = vmatprep.subr.mxu0 0.0
      %1961 = vmatpush2.msra.mxu0 0.0
      %1962 = vmatprep.mubr.f32.mxu0 0.0
      %1963 = vmatmul.mubr.f32.gmra.mxu0 %v1896
      %v1964 = vpop.f32.mrf.mxu0
      %v1965 = vadd.f32 0.0, %v1964
      %v1966 = vpop.f32.mrf.mxu0
      %1967 = vdwg.mxu0
      %1968 = vrot.lane.b32.xlu0 %v1457, 64
      %v1969 = vpop.permute.xlu0 %1968
      %v1972 = vsel %vm435, %v1814, 0
      %1974 = vmatprep.subr.mxu0 0.0
      %1975 = vmatpush1.msra.mxu0 0.0
      %1976 = vmatprep.subr.mxu0 0.0
      %1977 = vmatpush1.msra.mxu0 0.0
      %1978 = vmatprep.subr.mxu0 0.0
      %1979 = vmatpush1.msra.mxu0 0.0
      %1980 = vmatprep.subr.mxu0 0.0
      %1981 = vmatpush1.msra.mxu0 0.0
      %1982 = vmatprep.subr.mxu0 0.0
      %1983 = vmatpush1.msra.mxu0 0.0
      %1984 = vmatprep.subr.mxu0 0.0
      %1985 = vmatpush1.msra.mxu0 0.0
      %1986 = vmatprep.subr.mxu0 0.0
      %1987 = vmatpush1.msra.mxu0 0.0
      %1988 = vmatprep.subr.mxu0 0.0
      %1989 = vmatpush1.msra.mxu0 0.0
      %1990 = vmatprep.subr.mxu0 0.0
      %1991 = vmatpush1.msra.mxu0 0.0
      %1992 = vmatprep.subr.mxu0 0.0
      %1993 = vmatpush1.msra.mxu0 0.0
      %1994 = vmatprep.subr.mxu0 0.0
      %1995 = vmatpush1.msra.mxu0 0.0
      %1996 = vmatprep.subr.mxu0 0.0
      %1997 = vmatpush1.msra.mxu0 0.0
      %1998 = vmatprep.subr.mxu0 0.0
      %1999 = vmatpush1.msra.mxu0 0.0
      %2000 = vmatprep.subr.mxu0 0.0
      %2001 = vmatpush1.msra.mxu0 0.0
      %2002 = vmatprep.subr.mxu0 0.0
      %2003 = vmatpush1.msra.mxu0 0.0
      %2004 = vmatprep.subr.mxu0 0.0
      %2005 = vmatpush1.msra.mxu0 %v1969
      %2006 = vmatprep.subr.mxu0 0.0
      %2007 = vmatpush2.msra.mxu0 0.0
      %2008 = vmatprep.subr.mxu0 0.0
      %2009 = vmatpush2.msra.mxu0 0.0
      %2010 = vmatprep.subr.mxu0 0.0
      %2011 = vmatpush2.msra.mxu0 0.0
      %2012 = vmatprep.subr.mxu0 0.0
      %2013 = vmatpush2.msra.mxu0 0.0
      %2014 = vmatprep.subr.mxu0 0.0
      %2015 = vmatpush2.msra.mxu0 0.0
      %2016 = vmatprep.subr.mxu0 0.0
      %2017 = vmatpush2.msra.mxu0 0.0
      %2018 = vmatprep.subr.mxu0 0.0
      %2019 = vmatpush2.msra.mxu0 0.0
      %2020 = vmatprep.subr.mxu0 0.0
      %2021 = vmatpush2.msra.mxu0 0.0
      %2022 = vmatprep.subr.mxu0 0.0
      %2023 = vmatpush2.msra.mxu0 0.0
      %2024 = vmatprep.subr.mxu0 0.0
      %2025 = vmatpush2.msra.mxu0 0.0
      %2026 = vmatprep.subr.mxu0 0.0
      %2027 = vmatpush2.msra.mxu0 0.0
      %2028 = vmatprep.subr.mxu0 0.0
      %2029 = vmatpush2.msra.mxu0 0.0
      %2030 = vmatprep.subr.mxu0 0.0
      %2031 = vmatpush2.msra.mxu0 0.0
      %2032 = vmatprep.subr.mxu0 0.0
      %2033 = vmatpush2.msra.mxu0 0.0
      %2034 = vmatprep.subr.mxu0 0.0
      %2035 = vmatpush2.msra.mxu0 0.0
      %2036 = vmatprep.subr.mxu0 0.0
      %2037 = vmatpush2.msra.mxu0 0.0
      %2038 = vmatprep.mubr.f32.mxu0 0.0
      %2039 = vmatmul.mubr.f32.gmra.mxu0 %v1972
      %v2040 = vpop.f32.mrf.mxu0
      %v2041 = vadd.f32 0.0, %v2040
      %v2042 = vpop.f32.mrf.mxu0
      %2043 = vdwg.mxu0
      %2044 = vrot.lane.b32.xlu0 %v1459, 64
      %v2045 = vpop.permute.xlu0 %2044
      %v2048 = vsel %vm435, %v1815, 0
      %2050 = vmatprep.subr.mxu0 0.0
      %2051 = vmatpush1.msra.mxu0 0.0
      %2052 = vmatprep.subr.mxu0 0.0
      %2053 = vmatpush1.msra.mxu0 0.0
      %2054 = vmatprep.subr.mxu0 0.0
      %2055 = vmatpush1.msra.mxu0 0.0
      %2056 = vmatprep.subr.mxu0 0.0
      %2057 = vmatpush1.msra.mxu0 0.0
      %2058 = vmatprep.subr.mxu0 0.0
      %2059 = vmatpush1.msra.mxu0 0.0
      %2060 = vmatprep.subr.mxu0 0.0
      %2061 = vmatpush1.msra.mxu0 0.0
      %2062 = vmatprep.subr.mxu0 0.0
      %2063 = vmatpush1.msra.mxu0 0.0
      %2064 = vmatprep.subr.mxu0 0.0
      %2065 = vmatpush1.msra.mxu0 0.0
      %2066 = vmatprep.subr.mxu0 0.0
      %2067 = vmatpush1.msra.mxu0 0.0
      %2068 = vmatprep.subr.mxu0 0.0
      %2069 = vmatpush1.msra.mxu0 0.0
      %2070 = vmatprep.subr.mxu0 0.0
      %2071 = vmatpush1.msra.mxu0 0.0
      %2072 = vmatprep.subr.mxu0 0.0
      %2073 = vmatpush1.msra.mxu0 0.0
      %2074 = vmatprep.subr.mxu0 0.0
      %2075 = vmatpush1.msra.mxu0 0.0
      %2076 = vmatprep.subr.mxu0 0.0
      %2077 = vmatpush1.msra.mxu0 0.0
      %2078 = vmatprep.subr.mxu0 0.0
      %2079 = vmatpush1.msra.mxu0 0.0
      %2080 = vmatprep.subr.mxu0 0.0
      %2081 = vmatpush1.msra.mxu0 %v2045
      %2082 = vmatprep.subr.mxu0 0.0
      %2083 = vmatpush2.msra.mxu0 0.0
      %2084 = vmatprep.subr.mxu0 0.0
      %2085 = vmatpush2.msra.mxu0 0.0
      %2086 = vmatprep.subr.mxu0 0.0
      %2087 = vmatpush2.msra.mxu0 0.0
      %2088 = vmatprep.subr.mxu0 0.0
      %2089 = vmatpush2.msra.mxu0 0.0
      %2090 = vmatprep.subr.mxu0 0.0
      %2091 = vmatpush2.msra.mxu0 0.0
      %2092 = vmatprep.subr.mxu0 0.0
      %2093 = vmatpush2.msra.mxu0 0.0
      %2094 = vmatprep.subr.mxu0 0.0
      %2095 = vmatpush2.msra.mxu0 0.0
      %2096 = vmatprep.subr.mxu0 0.0
      %2097 = vmatpush2.msra.mxu0 0.0
      %2098 = vmatprep.subr.mxu0 0.0
      %2099 = vmatpush2.msra.mxu0 0.0
      %2100 = vmatprep.subr.mxu0 0.0
      %2101 = vmatpush2.msra.mxu0 0.0
      %2102 = vmatprep.subr.mxu0 0.0
      %2103 = vmatpush2.msra.mxu0 0.0
      %2104 = vmatprep.subr.mxu0 0.0
      %2105 = vmatpush2.msra.mxu0 0.0
      %2106 = vmatprep.subr.mxu0 0.0
      %2107 = vmatpush2.msra.mxu0 0.0
      %2108 = vmatprep.subr.mxu0 0.0
      %2109 = vmatpush2.msra.mxu0 0.0
      %2110 = vmatprep.subr.mxu0 0.0
      %2111 = vmatpush2.msra.mxu0 0.0
      %2112 = vmatprep.subr.mxu0 0.0
      %2113 = vmatpush2.msra.mxu0 0.0
      %2114 = vmatprep.mubr.f32.mxu0 0.0
      %2115 = vmatmul.mubr.f32.gmra.mxu0 %v2048
      %v2116 = vpop.f32.mrf.mxu0
      %v2117 = vadd.f32 0.0, %v2116
      %v2118 = vpop.f32.mrf.mxu0
      %2119 = vdwg.mxu0
      %2121 = vrot.lane.b32.xlu0 %v1965, 8
      %v2122 = vpop.permute.xlu0 %2121
      %2125 = vrot.lane.b32.xlu0 %v2041, 16
      %v2126 = vpop.permute.xlu0 %2125
      %2129 = vrot.lane.b32.xlu0 %v2117, 24
      %v2130 = vpop.permute.xlu0 %2129
      %v2132 = vsel %vm435, %v1889, %v2122
      %v2133 = vsel %vm1113, %v2132, %v2126
      %v2134 = vsel %vm1115, %v2133, %v2130
      %v2135 = vpack.c.bf16 %v2134, %v2134
      %v2136 = vlaneseq
      %v2137 = vshrl.u32 %v2136, 7
      %v2138 = vsub.s32 1, %v2137
      %v2139 = vrot.slane %v1392, %v2138
      %v2144 = vunpack.c.l.b16 %v1373
      %v2145 = vunpack.c.l.b16 %v1374
      %v2146 = vunpack.c.l.b16 %v1375
      %v2147 = vunpack.c.l.b16 %v1376
      %v2148 = vpack.c.b16 %v2145, %v2144
      %v2149 = vpack.c.b16 %v2147, %v2146
      %v2153 = vsel %vm319, %v2135, 0
      %2155 = vmatprep.subr.bf16.mxu0 0
      %2156 = vmatpush1.bf16.msra.mxu0 0
      %2157 = vmatprep.subr.bf16.mxu0 0
      %2158 = vmatpush1.bf16.msra.mxu0 0
      %2159 = vmatprep.subr.bf16.mxu0 0
      %2160 = vmatpush1.bf16.msra.mxu0 0
      %2161 = vmatprep.subr.bf16.mxu0 0
      %2162 = vmatpush1.bf16.msra.mxu0 0
      %2163 = vmatprep.subr.bf16.mxu0 0
      %2164 = vmatpush1.bf16.msra.mxu0 0
      %2165 = vmatprep.subr.bf16.mxu0 0
      %2166 = vmatpush1.bf16.msra.mxu0 0
      %2167 = vmatprep.subr.bf16.mxu0 0
      %2168 = vmatpush1.bf16.msra.mxu0 %v2149
      %2169 = vmatprep.subr.bf16.mxu0 0
      %2170 = vmatpush1.bf16.msra.mxu0 %v2148
      %2171 = vmatprep.subr.bf16.mxu0 0
      %2172 = vmatpush2.bf16.msra.mxu0 0
      %2173 = vmatprep.subr.bf16.mxu0 0
      %2174 = vmatpush2.bf16.msra.mxu0 0
      %2175 = vmatprep.subr.bf16.mxu0 0
      %2176 = vmatpush2.bf16.msra.mxu0 0
      %2177 = vmatprep.subr.bf16.mxu0 0
      %2178 = vmatpush2.bf16.msra.mxu0 0
      %2179 = vmatprep.subr.bf16.mxu0 0
      %2180 = vmatpush2.bf16.msra.mxu0 0
      %2181 = vmatprep.subr.bf16.mxu0 0
      %2182 = vmatpush2.bf16.msra.mxu0 0
      %2183 = vmatprep.subr.bf16.mxu0 0
      %2184 = vmatpush2.bf16.msra.mxu0 0
      %2185 = vmatprep.subr.bf16.mxu0 0
      %2186 = vmatpush2.bf16.msra.mxu0 0
      %2187 = vmatprep.mubr.bf16.mxu0 0
      %2188 = vmatmul.mubr.bf16.gmra.mxu0 %v2153
      %v2189 = vpop.f32.mrf.mxu0
      %v2190 = vadd.f32 %v2139, %v2189
      %v2191 = vpop.f32.mrf.mxu0
      %v2192 = vpop.f32.mrf.mxu0
      %v2193 = vpop.f32.mrf.mxu0
      %2194 = vdwg.mxu0
      %v2195 = vadd.f32 %v2190, %v1366
      %v2196 = vsel %vm319, %v2195, 0.0
      %2197 = vadd.xlane.f32.xlu0 %v2196
      %v2198 = vpop.xlane.xlu0 %2197
      %v2199 = vmul.f32 %v2198, %v323
      %v2200 = vsub.f32 %v2195, %v2199
      %v2201 = vmul.f32 %v2200, %v2200
      %v2202 = vsel %vm319, %v2201, 0.0
      %2203 = vadd.xlane.f32.xlu0 %v2202
      %v2204 = vpop.xlane.xlu0 %2203
      %v2205 = vmul.f32 %v2204, %v323
      %v2206 = vadd.f32 %v2205, 1e-12
      %v2207 = vrsqrt.pop %v2206
      %v2208 = vmul.f32 %v2200, %v2207
      %v2209 = vlaneseq
      %v2210 = vshrl.u32 %v2209, 7
      %v2211 = vsub.s32 2, %v2210
      %v2212 = vrot.slane %v1392, %v2211
      %v2213 = vmul.f32 %v2208, %v2212
      %v2214 = vlaneseq
      %v2215 = vshrl.u32 %v2214, 7
      %v2216 = vsub.s32 3, %v2215
      %v2217 = vrot.slane %v1392, %v2216
      %v2218 = vadd.f32 %v2213, %v2217
      %v2219 = vpack.c.bf16 %v2218, %v2218
      %v2220 = vlaneseq
      %v2221 = vshrl.u32 %v2220, 7
      %v2222 = vsub.s32 4, %v2221
      %v2223 = vrot.slane %v1392, %v2222
      %v2228 = vunpack.c.l.b16 %v1378
      %v2229 = vunpack.c.l.b16 %v1379
      %v2230 = vunpack.c.l.b16 %v1380
      %v2231 = vunpack.c.l.b16 %v1381
      %v2232 = vpack.c.b16 %v2229, %v2228
      %v2233 = vpack.c.b16 %v2231, %v2230
      %v2237 = vsel %vm319, %v2219, 0
      %2239 = vmatprep.subr.bf16.mxu0 0
      %2240 = vmatpush1.bf16.msra.mxu0 0
      %2241 = vmatprep.subr.bf16.mxu0 0
      %2242 = vmatpush1.bf16.msra.mxu0 0
      %2243 = vmatprep.subr.bf16.mxu0 0
      %2244 = vmatpush1.bf16.msra.mxu0 0
      %2245 = vmatprep.subr.bf16.mxu0 0
      %2246 = vmatpush1.bf16.msra.mxu0 0
      %2247 = vmatprep.subr.bf16.mxu0 0
      %2248 = vmatpush1.bf16.msra.mxu0 0
      %2249 = vmatprep.subr.bf16.mxu0 0
      %2250 = vmatpush1.bf16.msra.mxu0 0
      %2251 = vmatprep.subr.bf16.mxu0 0
      %2252 = vmatpush1.bf16.msra.mxu0 %v2233
      %2253 = vmatprep.subr.bf16.mxu0 0
      %2254 = vmatpush1.bf16.msra.mxu0 %v2232
      %2255 = vmatprep.subr.bf16.mxu0 0
      %2256 = vmatpush2.bf16.msra.mxu0 0
      %2257 = vmatprep.subr.bf16.mxu0 0
      %2258 = vmatpush2.bf16.msra.mxu0 0
      %2259 = vmatprep.subr.bf16.mxu0 0
      %2260 = vmatpush2.bf16.msra.mxu0 0
      %2261 = vmatprep.subr.bf16.mxu0 0
      %2262 = vmatpush2.bf16.msra.mxu0 0
      %2263 = vmatprep.subr.bf16.mxu0 0
      %2264 = vmatpush2.bf16.msra.mxu0 0
      %2265 = vmatprep.subr.bf16.mxu0 0
      %2266 = vmatpush2.bf16.msra.mxu0 0
      %2267 = vmatprep.subr.bf16.mxu0 0
      %2268 = vmatpush2.bf16.msra.mxu0 0
      %2269 = vmatprep.subr.bf16.mxu0 0
      %2270 = vmatpush2.bf16.msra.mxu0 0
      %2271 = vmatprep.mubr.bf16.mxu0 0
      %2272 = vmatmul.mubr.bf16.gmra.mxu0 %v2237
      %v2273 = vpop.f32.mrf.mxu0
      %v2274 = vadd.f32 %v2223, %v2273
      %v2275 = vpop.f32.mrf.mxu0
      %v2276 = vpop.f32.mrf.mxu0
      %v2277 = vpop.f32.mrf.mxu0
      %2278 = vdwg.mxu0
      %v2279 = vmul.f32 %v2274, %v2274
      %v2280 = vmul.f32 %v2274, %v2279
      %v2281 = vmul.f32 %v2280, 0.044715
      %v2282 = vadd.f32 %v2274, %v2281
      %v2283 = vmul.f32 %v2282, 0.7978846
      %v2284 = vtanh.pop %v2283
      %v2285 = vadd.f32 %v2284, 1.0
      %v2286 = vmul.f32 %v2285, 0.5
      %v2287 = vmul.f32 %v2274, %v2286
      %v2288 = vpack.c.bf16 %v2287, %v2287
      %v2289 = vlaneseq
      %v2290 = vshrl.u32 %v2289, 7
      %v2291 = vsub.s32 5, %v2290
      %v2292 = vrot.slane %v1392, %v2291
      %v2301 = vunpack.c.l.b16 %v1383
      %v2302 = vunpack.c.l.b16 %v1384
      %v2303 = vunpack.c.l.b16 %v1385
      %v2304 = vunpack.c.l.b16 %v1386
      %v2305 = vunpack.c.l.b16 %v1387
      %v2306 = vunpack.c.l.b16 %v1388
      %v2307 = vunpack.c.l.b16 %v1389
      %v2308 = vunpack.c.l.b16 %v1390
      %v2309 = vpack.c.b16 %v2302, %v2301
      %v2310 = vpack.c.b16 %v2304, %v2303
      %v2311 = vpack.c.b16 %v2306, %v2305
      %v2312 = vpack.c.b16 %v2308, %v2307
      %v2318 = vsel %vm1299, %v2288, 0
      %2320 = vmatprep.subr.bf16.mxu0 0
      %2321 = vmatpush1.bf16.msra.mxu0 0
      %2322 = vmatprep.subr.bf16.mxu0 0
      %2323 = vmatpush1.bf16.msra.mxu0 0
      %2324 = vmatprep.subr.bf16.mxu0 0
      %2325 = vmatpush1.bf16.msra.mxu0 0
      %2326 = vmatprep.subr.bf16.mxu0 0
      %2327 = vmatpush1.bf16.msra.mxu0 0
      %2328 = vmatprep.subr.bf16.mxu0 0
      %2329 = vmatpush1.bf16.msra.mxu0 %v2312
      %2330 = vmatprep.subr.bf16.mxu0 0
      %2331 = vmatpush1.bf16.msra.mxu0 %v2311
      %2332 = vmatprep.subr.bf16.mxu0 0
      %2333 = vmatpush1.bf16.msra.mxu0 %v2310
      %2334 = vmatprep.subr.bf16.mxu0 0
      %2335 = vmatpush1.bf16.msra.mxu0 %v2309
      %2336 = vmatprep.subr.bf16.mxu0 0
      %2337 = vmatpush2.bf16.msra.mxu0 0
      %2338 = vmatprep.subr.bf16.mxu0 0
      %2339 = vmatpush2.bf16.msra.mxu0 0
      %2340 = vmatprep.subr.bf16.mxu0 0
      %2341 = vmatpush2.bf16.msra.mxu0 0
      %2342 = vmatprep.subr.bf16.mxu0 0
      %2343 = vmatpush2.bf16.msra.mxu0 0
      %2344 = vmatprep.subr.bf16.mxu0 0
      %2345 = vmatpush2.bf16.msra.mxu0 0
      %2346 = vmatprep.subr.bf16.mxu0 0
      %2347 = vmatpush2.bf16.msra.mxu0 0
      %2348 = vmatprep.subr.bf16.mxu0 0
      %2349 = vmatpush2.bf16.msra.mxu0 0
      %2350 = vmatprep.subr.bf16.mxu0 0
      %2351 = vmatpush2.bf16.msra.mxu0 0
      %2352 = vmatprep.mubr.bf16.mxu0 0
      %2353 = vmatmul.mubr.bf16.gmra.mxu0 %v2318
      %v2354 = vpop.f32.mrf.mxu0
      %v2355 = vadd.f32 %v2292, %v2354
      %v2356 = vpop.f32.mrf.mxu0
      %v2357 = vpop.f32.mrf.mxu0
      %v2358 = vpop.f32.mrf.mxu0
      %2359 = vdwg.mxu0
      %v2360 = vadd.f32 %v2355, %v2218
      %v2361 = vsel %vm319, %v2360, 0.0
      %2362 = vadd.xlane.f32.xlu0 %v2361
      %v2363 = vpop.xlane.xlu0 %2362
      %v2364 = vmul.f32 %v2363, %v323
      %v2365 = vsub.f32 %v2360, %v2364
      %v2366 = vmul.f32 %v2365, %v2365
      %v2367 = vsel %vm319, %v2366, 0.0
      %2368 = vadd.xlane.f32.xlu0 %v2367
      %v2369 = vpop.xlane.xlu0 %2368
      %v2370 = vmul.f32 %v2369, %v323
      %v2371 = vadd.f32 %v2370, 1e-12
      %v2372 = vrsqrt.pop %v2371
      %v2373 = vmul.f32 %v2365, %v2372
      %v2374 = vlaneseq
      %v2375 = vshrl.u32 %v2374, 7
      %v2376 = vsub.s32 6, %v2375
      %v2377 = vrot.slane %v1392, %v2376
      %v2378 = vmul.f32 %v2373, %v2377
      %v2379 = vlaneseq
      %v2380 = vshrl.u32 %v2379, 7
      %v2381 = vsub.s32 7, %v2380
      %v2382 = vrot.slane %v1392, %v2381
      %v2383 = vadd.f32 %v2378, %v2382
      %vm2384 = vcmask 254976
      %2385 = vst.msk [vmem:[%s314] sm:$0x3] %vm2384, %v2383
      %p2386 = scmp.lt.s32.totalorder %s19, 1
      %s2387 = scalar_select %p2386, %s19, 1
      %s2388 = smul.addr %s2387, 2
      %s2389 = scalar_lea.vmem %s8, %s2388
      // Predicated region
      $region53: #{siamese_bert_forward.1} parent=51 // pred_check
        %p2390 = pneg %p215
      $region54: #{siamese_bert_forward.1} parent=51 // pred_check_branch
        %2392 = sbr.rel (%p2390) target = $region56
      $region55: #{siamese_bert_forward.1} parent=51 // pred_region
        _
      $region56: #{siamese_bert_forward.1} parent=51 // pred_fallthru
        _
    $region52: #{siamese_bert_forward.1} parent=5 // pred_fallthru
      _
    %p2393 = scmp.le.s32.totalorder 2, %s14
    // Predicated region
    $region57: #{siamese_bert_forward.1} parent=5 // pred_check
      %p2394 = pneg %p2393
    $region58: #{siamese_bert_forward.1} parent=5 // pred_check_branch
      %2396 = sbr.rel (%p2394) target = $region60
    $region59: #{siamese_bert_forward.1} parent=5 // pred_region
      %s2397 = ssub.s32 %s14, 2
      // Predicated region
      $region61: #{siamese_bert_forward.1} parent=59 // pred_check
        %p2398 = pneg %p221
      $region62: #{siamese_bert_forward.1} parent=59 // pred_check_branch
        %2400 = sbr.rel (%p2398) target = $region64
      $region63: #{siamese_bert_forward.1} parent=59 // pred_region
        %p2401 = scmp.lt.s32.totalorder %s20, 1
        %s2402 = scalar_select %p2401, %s20, 1
        %s2403 = smul.addr %s2402, 2
        %s2404 = scalar_lea.vmem %s8, %s2403
      $region64: #{siamese_bert_forward.1} parent=59 // pred_fallthru
        _
    $region60: #{siamese_bert_forward.1} parent=5 // pred_fallthru
      _
  $region6: #{siamese_bert_forward.1} parent=0 // loop_footer
    %s18 = sadd.s32 1, %s14
  $region7: #{siamese_bert_forward.1} parent=0 // loop_footer_branch
    %13 = sbr.rel target = $region3
  $region8: #{siamese_bert_forward.1} parent=0 // loop_exit
    _

</llo_original>
